<compile_context>
chip_gen: v7x
topology: tpu7x:2x2x1
jax: 0.10.0
libtpu: 0.0.40
codegen_flags: <defaults>
</compile_context>

<pallas_src>
import math
import jax
import jax.numpy as jnp
from jax import lax
from jax.experimental import pallas as pl
from jax.experimental.pallas import tpu as pltpu

VMEM_LIMIT_BYTES = 64 * 1024 * 1024   # explicit scoped-VMEM budget (<= v7x physical)


# ------------------------------ shared helpers ------------------------------

def _layer_norm(x, gamma, beta, eps=1e-5):
    # Matches the module's custom LayerNorm: torch.var() default is UNBIASED (d-1).
    d = x.shape[-1]
    mean = jnp.mean(x, axis=-1, keepdims=True)
    diff = x - mean
    var = jnp.sum(diff * diff, axis=-1, keepdims=True) * (1.0 / (d - 1))
    return gamma * (diff * lax.rsqrt(var + eps)) + beta


def _divisor_tile(n, target=256):
    """Largest divisor of n that is a multiple of 8 and <= target, else n."""
    for t in range(min(n, target), 7, -1):
        if n % t == 0 and t % 8 == 0:
            return t
    return n


def _row_tile(m, target=256):
    """Row tile: multiple of 8, <= target, and at least two grid steps when m
    allows (input is padded to a multiple of the tile, so no divisor needed)."""
    half = ((m + 1) // 2 + 7) // 8 * 8
    return max(8, min(target, half))


def _hidden_tile(hf, target=512):
    """Hidden-dim (reduction) tile: full Hf when small, else a multiple-of-128
    divisor <= target (lane-aligned weight blocks)."""
    if hf <= target:
        return hf
    for t in range((min(hf, target) // 128) * 128, 127, -128):
        if hf % t == 0:
            return t
    return hf


# --------------------- kernel 1: fused MHA + residual + LN ------------------

def make_mha_ln_kernel(n_head, d_model, use_mask):
    D = d_model
    dh = D // n_head

    def kernel(*refs):
        if use_mask:
            (xf_ref, xq_ref, wq_ref, bq_ref, wkv_ref, bkv_ref,
             wfc_ref, bfc_ref, g_ref, b_ref, m_ref,
             o_ref, k_sc, v_sc, att_sc) = refs
        else:
            (xf_ref, xq_ref, wq_ref, bq_ref, wkv_ref, bkv_ref,
             wfc_ref, bfc_ref, g_ref, b_ref,
             o_ref, k_sc, v_sc, att_sc) = refs
            m_ref = None

        qi = pl.program_id(1)

        # K/V projection once per batch row: single wide bf16 MXU matmul,
        # cached in bf16 VMEM scratch and reused by every query tile.
        @pl.when(qi == 0)
        def _():
            xf = xf_ref[0]                                        # (S, D) f32
            kv = (jnp.dot(xf.astype(jnp.bfloat16), wkv_ref[...],
                          preferred_element_type=jnp.float32) + bkv_ref[...])
            k_sc[...] = kv[:, :D].astype(jnp.bfloat16)
            v_sc[...] = kv[:, D:].astype(jnp.bfloat16)

        xq = xq_ref[0]                                            # (tq, D) f32
        # Q projection for this tile only (1/sqrt(dh) already folded into Wq/bq).
        q = (jnp.dot(xq.astype(jnp.bfloat16), wq_ref[...],
                     preferred_element_type=jnp.float32) + bq_ref[...]
             ).astype(jnp.bfloat16)                               # (tq, D)

        if use_mask:
            # Hoisted out of the head loop: one compare+select instead of n_head.
            bias = jnp.where(m_ref[...] == 0.0,
                             jnp.float32(-1e9), jnp.float32(0.0))  # (tq, S)

        for h in range(n_head):                                   # static unroll
            sl = slice(h * dh, (h + 1) * dh)
            # scores = q_h @ k_h^T without materializing a transposed K tile.
            s = lax.dot_general(q[:, sl], k_sc[:, sl],
                                (((1,), (1,)), ((), ())),
                                preferred_element_type=jnp.float32)
            if use_mask:
                s = s + bias
            s = s - jnp.max(s, axis=-1, keepdims=True)
            e = jnp.exp(s)
            p = e * pl.reciprocal(jnp.sum(e, axis=-1, keepdims=True), approx=False)
            att_sc[:, sl] = jnp.dot(p.astype(jnp.bfloat16), v_sc[:, sl],
                                    preferred_element_type=jnp.float32)

        # One full-width output projection (contraction = D) instead of n_head
        # skinny (contraction = dh) matmuls.
        y = (jnp.dot(att_sc[...].astype(jnp.bfloat16), wfc_ref[...],
                     preferred_element_type=jnp.float32) + bfc_ref[...])
        # dropout1 == identity (eval mode); residual + LayerNorm fused here.
        o_ref[0] = _layer_norm(xq + y, g_ref[...], b_ref[...])

    return kernel


def multi_head_attention_ln(x, prep, n_head, mask=None):
    B, S, D = x.shape
    assert D % n_head == 0
    tq = _divisor_tile(S, target=256)
    n_q = S // tq

    kernel = make_mha_ln_kernel(n_head, D, use_mask=mask is not None)
    in_specs = [
        pl.BlockSpec((1, S, D), lambda b, qi: (b, 0, 0)),     # full x (K/V source)
        pl.BlockSpec((1, tq, D), lambda b, qi: (b, qi, 0)),   # query / residual tile
        pl.BlockSpec((D, D), lambda b, qi: (0, 0)),           # Wq (pre-scaled, bf16)
        pl.BlockSpec((1, D), lambda b, qi: (0, 0)),           # bq (pre-scaled)
        pl.BlockSpec((D, 2 * D), lambda b, qi: (0, 0)),       # [Wk|Wv] (bf16)
        pl.BlockSpec((1, 2 * D), lambda b, qi: (0, 0)),       # [bk|bv]
        pl.BlockSpec((D, D), lambda b, qi: (0, 0)),           # W_fc (bf16)
        pl.BlockSpec((1, D), lambda b, qi: (0, 0)),           # b_fc
        pl.BlockSpec((1, D), lambda b, qi: (0, 0)),           # LN gamma
        pl.BlockSpec((1, D), lambda b, qi: (0, 0)),           # LN beta
    ]
    args = [x, x, prep["wq"], prep["bq"], prep["wkv"], prep["bkv"],
            prep["wfc"], prep["bfc"], prep["ln1_g"], prep["ln1_b"]]
    if mask is not None:                                      # 0/1 padding mask (0 -> masked)
        in_specs.append(pl.BlockSpec((tq, S), lambda b, qi: (qi, 0)))
        args.append(mask.astype(jnp.float32))

    return pl.pallas_call(
        kernel,
        out_shape=jax.ShapeDtypeStruct((B, S, D), jnp.float32),
        grid=(B, n_q),
        in_specs=in_specs,
        out_specs=pl.BlockSpec((1, tq, D), lambda b, qi: (b, qi, 0)),
        scratch_shapes=[
            pltpu.VMEM((S, D), jnp.bfloat16),      # cached K
            pltpu.VMEM((S, D), jnp.bfloat16),      # cached V
            pltpu.VMEM((tq, D), jnp.float32),      # per-head attention outputs
        ],
        compiler_params=pltpu.CompilerParams(
            dimension_semantics=("parallel", "arbitrary"),
            vmem_limit_bytes=VMEM_LIMIT_BYTES),
    )(*args)


# --------------------- kernel 2: fused FFN + residual + LN ------------------

def _ffn_ln_kernel(x_ref, w1_ref, b1_ref, w2_ref, b2_ref, g_ref, bb_ref,
                   o_ref, acc_ref):
    kk = pl.program_id(1)

    @pl.when(kk == 0)
    def _():
        acc_ref[...] = jnp.zeros_like(acc_ref)

    x = x_ref[...]                                            # (tm, D) f32, resident across kk
    h = (jnp.dot(x.astype(jnp.bfloat16), w1_ref[...],
                 preferred_element_type=jnp.float32) + b1_ref[...])
    h = jnp.maximum(h, 0.0)                                   # ReLU (dropout == identity)
    acc_ref[...] += jnp.dot(h.astype(jnp.bfloat16), w2_ref[...],
                            preferred_element_type=jnp.float32)

    @pl.when(kk == pl.num_programs(1) - 1)
    def _():
        y = acc_ref[...] + b2_ref[...]
        o_ref[...] = _layer_norm(x + y, g_ref[...], bb_ref[...])


def ffn_ln(x2d, prep):
    M, D = x2d.shape
    Hf = prep["w1"].shape[1]

    tm = _row_tile(M)
    m_pad = pl.cdiv(M, tm) * tm
    if m_pad != M:
        x2d = jnp.pad(x2d, ((0, m_pad - M), (0, 0)))
    tk = _hidden_tile(Hf)

    out = pl.pallas_call(
        _ffn_ln_kernel,
        out_shape=jax.ShapeDtypeStruct((m_pad, D), jnp.float32),
        grid=(m_pad // tm, Hf // tk),
        in_specs=[
            pl.BlockSpec((tm, D), lambda i, k: (i, 0)),       # input / residual tile
            pl.BlockSpec((D, tk), lambda i, k: (0, k)),       # W1 chunk (bf16)
            pl.BlockSpec((1, tk), lambda i, k: (0, k)),       # b1 chunk
            pl.BlockSpec((tk, D), lambda i, k: (k, 0)),       # W2 chunk (bf16)
            pl.BlockSpec((1, D), lambda i, k: (0, 0)),        # b2
            pl.BlockSpec((1, D), lambda i, k: (0, 0)),        # LN gamma
            pl.BlockSpec((1, D), lambda i, k: (0, 0)),        # LN beta
        ],
        out_specs=pl.BlockSpec((tm, D), lambda i, k: (i, 0)),
        scratch_shapes=[pltpu.VMEM((tm, D), jnp.float32)],    # FFN accumulator
        compiler_params=pltpu.CompilerParams(
            dimension_semantics=("parallel", "arbitrary"),
            vmem_limit_bytes=VMEM_LIMIT_BYTES),
    )(x2d, prep["w1"], prep["b1"], prep["w2"], prep["b2"],
      prep["ln2_g"], prep["ln2_b"])
    return out[:M] if m_pad != M else out


# ------------------------------ EncoderLayer --------------------------------

def prepare_params(params, n_head):
    """One-time parameter prep: fuse Wk|Wv, fold 1/sqrt(d_head) into Wq/bq,
    cast matmul weights to bf16 (f32 accumulation in-kernel), reshape biases."""
    mha, ffn = params["mha"], params["ffn"]
    D = mha["w_q"].shape[0]
    Hf = ffn["w1"].shape[1]
    dh = D // n_head
    scale = 1.0 / math.sqrt(dh)
    return {
        "wq": (mha["w_q"] * scale).astype(jnp.bfloat16),
        "bq": (mha["b_q"] * scale).reshape(1, D).astype(jnp.float32),
        "wkv": jnp.concatenate([mha["w_k"], mha["w_v"]], axis=1).astype(jnp.bfloat16),
        "bkv": jnp.concatenate([mha["b_k"], mha["b_v"]]).reshape(1, 2 * D).astype(jnp.float32),
        "wfc": mha["w_fc"].astype(jnp.bfloat16),
        "bfc": mha["b_fc"].reshape(1, D).astype(jnp.float32),
        "w1": ffn["w1"].astype(jnp.bfloat16),
        "b1": ffn["b1"].reshape(1, Hf).astype(jnp.float32),
        "w2": ffn["w2"].astype(jnp.bfloat16),
        "b2": ffn["b2"].reshape(1, D).astype(jnp.float32),
        "ln1_g": params["ln1"]["gamma"].reshape(1, D).astype(jnp.float32),
        "ln1_b": params["ln1"]["beta"].reshape(1, D).astype(jnp.float32),
        "ln2_g": params["ln2"]["gamma"].reshape(1, D).astype(jnp.float32),
        "ln2_b": params["ln2"]["beta"].reshape(1, D).astype(jnp.float32),
    }


def encoder_layer(x, prep, n_head, mask=None):
    B, S, D = x.shape
    # self-attention + residual + LN1 (fused kernel 1)
    x1 = multi_head_attention_ln(x, prep, n_head, mask)
    # position-wise FFN + residual + LN2 (fused kernel 2)
    out2d = ffn_ln(x1.reshape(B * S, D), prep)
    return out2d.reshape(B, S, D)


def init_params(key, d_model, ffn_hidden):
    ks = jax.random.split(key, 12)
    it = iter(range(12))

    def lin(din, dout):
        kw, kb = ks[next(it)], ks[next(it)]
        bound = 1.0 / math.sqrt(din)
        w = jax.random.uniform(kw, (din, dout), jnp.float32, -bound, bound)
        b = jax.random.uniform(kb, (dout,), jnp.float32, -bound, bound)
        return w, b

    mha = {}
    for name in ("q", "k", "v", "fc"):
        w, b = lin(d_model, d_model)
        mha[f"w_{name}"] = w
        mha[f"b_{name}"] = b
    w1, b1 = lin(d_model, ffn_hidden)
    w2, b2 = lin(ffn_hidden, d_model)
    return {
        "mha": mha,
        "ffn": {"w1": w1, "b1": b1, "w2": w2, "b2": b2},
        "ln1": {"gamma": jnp.ones((d_model,), jnp.float32),
                "beta": jnp.zeros((d_model,), jnp.float32)},
        "ln2": {"gamma": jnp.ones((d_model,), jnp.float32),
                "beta": jnp.zeros((d_model,), jnp.float32)},
    }


if __name__ == "__main__":
    # Small demo shapes consistent with the module (d_model=32, 4 heads, ffn=64).
    # NOTE: for production shapes, keep d_model / d_head as multiples of 128
    # lanes for unmasked, lane-dense stores and full MXU feeds.
    B, S, D = 2, 8, 32
    n_head = 4
    ffn_hidden = 64

    key = jax.random.PRNGKey(0)
    k_x, k_p = jax.random.split(key)
    x = jax.random.normal(k_x, (B, S, D), jnp.float32)
    params = init_params(k_p, D, ffn_hidden)
    prep = prepare_params(params, n_head)

    # EncoderLayer.forward default: mask=None (no attention masking).
    out = encoder_layer(x, prep, n_head, mask=None)
    out = jax.block_until_ready(out)
    assert out.shape == (B, S, D)
    assert bool(jnp.all(jnp.isfinite(out)))
    print("KERNEL_OK")
</pallas_src>

<mosaic_0001>
module attributes {stable_mosaic.version = 11 : i64} {
  func.func @kernel(%arg0: i32, %arg1: i32, %arg2: memref<1x8x32xf32, #tpu.memory_space<vmem>>, %arg3: memref<1x8x32xf32, #tpu.memory_space<vmem>>, %arg4: memref<32x32xbf16, #tpu.memory_space<vmem>>, %arg5: memref<1x32xf32, #tpu.memory_space<vmem>>, %arg6: memref<32x64xbf16, #tpu.memory_space<vmem>>, %arg7: memref<1x64xf32, #tpu.memory_space<vmem>>, %arg8: memref<32x32xbf16, #tpu.memory_space<vmem>>, %arg9: memref<1x32xf32, #tpu.memory_space<vmem>>, %arg10: memref<1x32xf32, #tpu.memory_space<vmem>>, %arg11: memref<1x32xf32, #tpu.memory_space<vmem>>, %arg12: memref<1x8x32xf32, #tpu.memory_space<vmem>>, %arg13: memref<8x32xbf16, #tpu.memory_space<vmem>>, %arg14: memref<8x32xbf16, #tpu.memory_space<vmem>>, %arg15: memref<8x32xf32, #tpu.memory_space<vmem>>) attributes {dimension_semantics = [#tpu.dimension_semantics<parallel>, #tpu.dimension_semantics<arbitrary>], iteration_bounds = array<i64: 2, 1>, scalar_prefetch = 0 : i64, scratch_operands = 3 : i64, tpu.core_type = #tpu.core_type<tc>, window_params = [{transform_indices = @transform_0, window_bounds = array<i64: 1, 8, 32>}, {transform_indices = @transform_1, window_bounds = array<i64: 1, 8, 32>}, {pipeline_mode = #tpu.pipeline_mode<synchronous>, transform_indices = @transform_2, window_bounds = array<i64: 32, 32>}, {pipeline_mode = #tpu.pipeline_mode<synchronous>, transform_indices = @transform_3, window_bounds = array<i64: 1, 32>}, {pipeline_mode = #tpu.pipeline_mode<synchronous>, transform_indices = @transform_4, window_bounds = array<i64: 32, 64>}, {pipeline_mode = #tpu.pipeline_mode<synchronous>, transform_indices = @transform_5, window_bounds = array<i64: 1, 64>}, {pipeline_mode = #tpu.pipeline_mode<synchronous>, transform_indices = @transform_6, window_bounds = array<i64: 32, 32>}, {pipeline_mode = #tpu.pipeline_mode<synchronous>, transform_indices = @transform_7, window_bounds = array<i64: 1, 32>}, {pipeline_mode = #tpu.pipeline_mode<synchronous>, transform_indices = @transform_8, window_bounds = array<i64: 1, 32>}, {pipeline_mode = #tpu.pipeline_mode<synchronous>, transform_indices = @transform_9, window_bounds = array<i64: 1, 32>}, {transform_indices = @transform_10, window_bounds = array<i64: 1, 8, 32>}]} {
    %c0_i32 = arith.constant 0 : i32
    %0 = arith.cmpi eq, %arg1, %c0_i32 : i32
    %1 = arith.extui %0 : i1 to i32
    %c0_i32_0 = arith.constant 0 : i32
    %2 = arith.cmpi ne, %1, %c0_i32_0 : i32
    scf.if %2 {
      %c0_63 = arith.constant 0 : index
      %c0_64 = arith.constant 0 : index
      %c0_65 = arith.constant 0 : index
      %113 = vector.load %arg2[%c0_63, %c0_64, %c0_65] : memref<1x8x32xf32, #tpu.memory_space<vmem>>, vector<1x8x32xf32>
      %114 = vector.shape_cast %113 : vector<1x8x32xf32> to vector<8x32xf32>
      %115 = arith.truncf %114 : vector<8x32xf32> to vector<8x32xbf16>
      %c0_66 = arith.constant 0 : index
      %c0_67 = arith.constant 0 : index
      %116 = vector.load %arg6[%c0_66, %c0_67] : memref<32x64xbf16, #tpu.memory_space<vmem>>, vector<32x64xbf16>
      %cst_68 = arith.constant dense<0.000000e+00> : vector<8x64xf32>
      %117 = tpu.matmul %115, %116, %cst_68 {dimension_numbers = #tpu.dot_dimension_numbers<[1], [0], [0], [1], [0, 0, 1, 1], [], []>} : vector<8x32xbf16>, vector<32x64xbf16>, vector<8x64xf32> -> vector<8x64xf32>
      %c0_69 = arith.constant 0 : index
      %c0_70 = arith.constant 0 : index
      %118 = vector.load %arg7[%c0_69, %c0_70] : memref<1x64xf32, #tpu.memory_space<vmem>>, vector<1x64xf32>
      %119 = vector.broadcast %118 : vector<1x64xf32> to vector<8x64xf32>
      %120 = arith.addf %117, %119 : vector<8x64xf32>
      %121 = vector.extract_strided_slice %120 {offsets = [0, 0], sizes = [8, 32], strides = [1, 1]} : vector<8x64xf32> to vector<8x32xf32>
      %122 = arith.truncf %121 : vector<8x32xf32> to vector<8x32xbf16>
      %c0_71 = arith.constant 0 : index
      %c0_72 = arith.constant 0 : index
      %123 = vector.load %arg13[%c0_71, %c0_72] : memref<8x32xbf16, #tpu.memory_space<vmem>>, vector<8x32xbf16>
      tpu.vector_store %arg13[%c0_71, %c0_72], %122 {strides = array<i32>} : memref<8x32xbf16, #tpu.memory_space<vmem>>, vector<8x32xbf16>,
      %124 = vector.extract_strided_slice %120 {offsets = [0, 32], sizes = [8, 32], strides = [1, 1]} : vector<8x64xf32> to vector<8x32xf32>
      %125 = arith.truncf %124 : vector<8x32xf32> to vector<8x32xbf16>
      %c0_73 = arith.constant 0 : index
      %c0_74 = arith.constant 0 : index
      %126 = vector.load %arg14[%c0_73, %c0_74] : memref<8x32xbf16, #tpu.memory_space<vmem>>, vector<8x32xbf16>
      tpu.vector_store %arg14[%c0_73, %c0_74], %125 {strides = array<i32>} : memref<8x32xbf16, #tpu.memory_space<vmem>>, vector<8x32xbf16>,
    } else {
    }
    %c0 = arith.constant 0 : index
    %c0_1 = arith.constant 0 : index
    %c0_2 = arith.constant 0 : index
    %3 = vector.load %arg3[%c0, %c0_1, %c0_2] : memref<1x8x32xf32, #tpu.memory_space<vmem>>, vector<1x8x32xf32>
    %4 = vector.shape_cast %3 : vector<1x8x32xf32> to vector<8x32xf32>
    %5 = arith.truncf %4 : vector<8x32xf32> to vector<8x32xbf16>
    %c0_3 = arith.constant 0 : index
    %c0_4 = arith.constant 0 : index
    %6 = vector.load %arg4[%c0_3, %c0_4] : memref<32x32xbf16, #tpu.memory_space<vmem>>, vector<32x32xbf16>
    %cst = arith.constant dense<0.000000e+00> : vector<8x32xf32>
    %7 = tpu.matmul %5, %6, %cst {dimension_numbers = #tpu.dot_dimension_numbers<[1], [0], [0], [1], [0, 0, 1, 1], [], []>} : vector<8x32xbf16>, vector<32x32xbf16>, vector<8x32xf32> -> vector<8x32xf32>
    %c0_5 = arith.constant 0 : index
    %c0_6 = arith.constant 0 : index
    %8 = vector.load %arg5[%c0_5, %c0_6] : memref<1x32xf32, #tpu.memory_space<vmem>>, vector<1x32xf32>
    %9 = vector.broadcast %8 : vector<1x32xf32> to vector<8x32xf32>
    %10 = arith.addf %7, %9 : vector<8x32xf32>
    %11 = arith.truncf %10 : vector<8x32xf32> to vector<8x32xbf16>
    %12 = vector.extract_strided_slice %11 {offsets = [0, 0], sizes = [8, 8], strides = [1, 1]} : vector<8x32xbf16> to vector<8x8xbf16>
    %c0_7 = arith.constant 0 : index
    %c0_8 = arith.constant 0 : index
    %13 = vector.load %arg13[%c0_7, %c0_8] : memref<8x32xbf16, #tpu.memory_space<vmem>>, vector<8x8xbf16>
    %cst_9 = arith.constant dense<0.000000e+00> : vector<8x8xf32>
    %14 = tpu.matmul %12, %13, %cst_9 {dimension_numbers = #tpu.dot_dimension_numbers<[1], [1], [0], [0], [0, 0, 1, 0], [], []>} : vector<8x8xbf16>, vector<8x8xbf16>, vector<8x8xf32> -> vector<8x8xf32>
    %cst_10 = arith.constant dense<0xFF800000> : vector<8xf32>
    %15 = vector.multi_reduction <maximumf>, %14, %cst_10 [1] : vector<8x8xf32> to vector<8xf32>
    %16 = vector.shape_cast %15 : vector<8xf32> to vector<8x1xf32>
    %17 = vector.broadcast %16 : vector<8x1xf32> to vector<8x8xf32>
    %18 = arith.subf %14, %17 : vector<8x8xf32>
    %19 = math.exp %18 : vector<8x8xf32>
    %cst_11 = arith.constant dense<0.000000e+00> : vector<8xf32>
    %20 = vector.multi_reduction <add>, %19, %cst_11 [1] : vector<8x8xf32> to vector<8xf32>
    %21 = vector.shape_cast %20 : vector<8xf32> to vector<8x1xf32>
    %22 = tpu.reciprocal %21 : vector<8x1xf32> -> vector<8x1xf32>
    %23 = vector.broadcast %22 : vector<8x1xf32> to vector<8x8xf32>
    %24 = arith.mulf %19, %23 : vector<8x8xf32>
    %25 = arith.truncf %24 : vector<8x8xf32> to vector<8x8xbf16>
    %c0_12 = arith.constant 0 : index
    %c0_13 = arith.constant 0 : index
    %26 = vector.load %arg14[%c0_12, %c0_13] : memref<8x32xbf16, #tpu.memory_space<vmem>>, vector<8x8xbf16>
    %cst_14 = arith.constant dense<0.000000e+00> : vector<8x8xf32>
    %27 = tpu.matmul %25, %26, %cst_14 {dimension_numbers = #tpu.dot_dimension_numbers<[1], [0], [0], [1], [0, 0, 1, 1], [], []>} : vector<8x8xbf16>, vector<8x8xbf16>, vector<8x8xf32> -> vector<8x8xf32>
    %c0_15 = arith.constant 0 : index
    %c0_16 = arith.constant 0 : index
    %28 = vector.load %arg15[%c0_15, %c0_16] : memref<8x32xf32, #tpu.memory_space<vmem>>, vector<8x8xf32>
    tpu.vector_store %arg15[%c0_15, %c0_16], %27 {strides = array<i32>} : memref<8x32xf32, #tpu.memory_space<vmem>>, vector<8x8xf32>,
    %29 = vector.extract_strided_slice %11 {offsets = [0, 8], sizes = [8, 8], strides = [1, 1]} : vector<8x32xbf16> to vector<8x8xbf16>
    %c0_17 = arith.constant 0 : index
    %c8 = arith.constant 8 : index
    %30 = vector.load %arg13[%c0_17, %c8] : memref<8x32xbf16, #tpu.memory_space<vmem>>, vector<8x8xbf16>
    %cst_18 = arith.constant dense<0.000000e+00> : vector<8x8xf32>
    %31 = tpu.matmul %29, %30, %cst_18 {dimension_numbers = #tpu.dot_dimension_numbers<[1], [1], [0], [0], [0, 0, 1, 0], [], []>} : vector<8x8xbf16>, vector<8x8xbf16>, vector<8x8xf32> -> vector<8x8xf32>
    %cst_19 = arith.constant dense<0xFF800000> : vector<8xf32>
    %32 = vector.multi_reduction <maximumf>, %31, %cst_19 [1] : vector<8x8xf32> to vector<8xf32>
    %33 = vector.shape_cast %32 : vector<8xf32> to vector<8x1xf32>
    %34 = vector.broadcast %33 : vector<8x1xf32> to vector<8x8xf32>
    %35 = arith.subf %31, %34 : vector<8x8xf32>
    %36 = math.exp %35 : vector<8x8xf32>
    %cst_20 = arith.constant dense<0.000000e+00> : vector<8xf32>
    %37 = vector.multi_reduction <add>, %36, %cst_20 [1] : vector<8x8xf32> to vector<8xf32>
    %38 = vector.shape_cast %37 : vector<8xf32> to vector<8x1xf32>
    %39 = tpu.reciprocal %38 : vector<8x1xf32> -> vector<8x1xf32>
    %40 = vector.broadcast %39 : vector<8x1xf32> to vector<8x8xf32>
    %41 = arith.mulf %36, %40 : vector<8x8xf32>
    %42 = arith.truncf %41 : vector<8x8xf32> to vector<8x8xbf16>
    %c0_21 = arith.constant 0 : index
    %c8_22 = arith.constant 8 : index
    %43 = vector.load %arg14[%c0_21, %c8_22] : memref<8x32xbf16, #tpu.memory_space<vmem>>, vector<8x8xbf16>
    %cst_23 = arith.constant dense<0.000000e+00> : vector<8x8xf32>
    %44 = tpu.matmul %42, %43, %cst_23 {dimension_numbers = #tpu.dot_dimension_numbers<[1], [0], [0], [1], [0, 0, 1, 1], [], []>} : vector<8x8xbf16>, vector<8x8xbf16>, vector<8x8xf32> -> vector<8x8xf32>
    %c0_24 = arith.constant 0 : index
    %c8_25 = arith.constant 8 : index
    %45 = vector.load %arg15[%c0_24, %c8_25] : memref<8x32xf32, #tpu.memory_space<vmem>>, vector<8x8xf32>
    tpu.vector_store %arg15[%c0_24, %c8_25], %44 {strides = array<i32>} : memref<8x32xf32, #tpu.memory_space<vmem>>, vector<8x8xf32>,
    %46 = vector.extract_strided_slice %11 {offsets = [0, 16], sizes = [8, 8], strides = [1, 1]} : vector<8x32xbf16> to vector<8x8xbf16>
    %c0_26 = arith.constant 0 : index
    %c16 = arith.constant 16 : index
    %47 = vector.load %arg13[%c0_26, %c16] : memref<8x32xbf16, #tpu.memory_space<vmem>>, vector<8x8xbf16>
    %cst_27 = arith.constant dense<0.000000e+00> : vector<8x8xf32>
    %48 = tpu.matmul %46, %47, %cst_27 {dimension_numbers = #tpu.dot_dimension_numbers<[1], [1], [0], [0], [0, 0, 1, 0], [], []>} : vector<8x8xbf16>, vector<8x8xbf16>, vector<8x8xf32> -> vector<8x8xf32>
    %cst_28 = arith.constant dense<0xFF800000> : vector<8xf32>
    %49 = vector.multi_reduction <maximumf>, %48, %cst_28 [1] : vector<8x8xf32> to vector<8xf32>
    %50 = vector.shape_cast %49 : vector<8xf32> to vector<8x1xf32>
    %51 = vector.broadcast %50 : vector<8x1xf32> to vector<8x8xf32>
    %52 = arith.subf %48, %51 : vector<8x8xf32>
    %53 = math.exp %52 : vector<8x8xf32>
    %cst_29 = arith.constant dense<0.000000e+00> : vector<8xf32>
    %54 = vector.multi_reduction <add>, %53, %cst_29 [1] : vector<8x8xf32> to vector<8xf32>
    %55 = vector.shape_cast %54 : vector<8xf32> to vector<8x1xf32>
    %56 = tpu.reciprocal %55 : vector<8x1xf32> -> vector<8x1xf32>
    %57 = vector.broadcast %56 : vector<8x1xf32> to vector<8x8xf32>
    %58 = arith.mulf %53, %57 : vector<8x8xf32>
    %59 = arith.truncf %58 : vector<8x8xf32> to vector<8x8xbf16>
    %c0_30 = arith.constant 0 : index
    %c16_31 = arith.constant 16 : index
    %60 = vector.load %arg14[%c0_30, %c16_31] : memref<8x32xbf16, #tpu.memory_space<vmem>>, vector<8x8xbf16>
    %cst_32 = arith.constant dense<0.000000e+00> : vector<8x8xf32>
    %61 = tpu.matmul %59, %60, %cst_32 {dimension_numbers = #tpu.dot_dimension_numbers<[1], [0], [0], [1], [0, 0, 1, 1], [], []>} : vector<8x8xbf16>, vector<8x8xbf16>, vector<8x8xf32> -> vector<8x8xf32>
    %c0_33 = arith.constant 0 : index
    %c16_34 = arith.constant 16 : index
    %62 = vector.load %arg15[%c0_33, %c16_34] : memref<8x32xf32, #tpu.memory_space<vmem>>, vector<8x8xf32>
    tpu.vector_store %arg15[%c0_33, %c16_34], %61 {strides = array<i32>} : memref<8x32xf32, #tpu.memory_space<vmem>>, vector<8x8xf32>,
    %63 = vector.extract_strided_slice %11 {offsets = [0, 24], sizes = [8, 8], strides = [1, 1]} : vector<8x32xbf16> to vector<8x8xbf16>
    %c0_35 = arith.constant 0 : index
    %c24 = arith.constant 24 : index
    %64 = vector.load %arg13[%c0_35, %c24] : memref<8x32xbf16, #tpu.memory_space<vmem>>, vector<8x8xbf16>
    %cst_36 = arith.constant dense<0.000000e+00> : vector<8x8xf32>
    %65 = tpu.matmul %63, %64, %cst_36 {dimension_numbers = #tpu.dot_dimension_numbers<[1], [1], [0], [0], [0, 0, 1, 0], [], []>} : vector<8x8xbf16>, vector<8x8xbf16>, vector<8x8xf32> -> vector<8x8xf32>
    %cst_37 = arith.constant dense<0xFF800000> : vector<8xf32>
    %66 = vector.multi_reduction <maximumf>, %65, %cst_37 [1] : vector<8x8xf32> to vector<8xf32>
    %67 = vector.shape_cast %66 : vector<8xf32> to vector<8x1xf32>
    %68 = vector.broadcast %67 : vector<8x1xf32> to vector<8x8xf32>
    %69 = arith.subf %65, %68 : vector<8x8xf32>
    %70 = math.exp %69 : vector<8x8xf32>
    %cst_38 = arith.constant dense<0.000000e+00> : vector<8xf32>
    %71 = vector.multi_reduction <add>, %70, %cst_38 [1] : vector<8x8xf32> to vector<8xf32>
    %72 = vector.shape_cast %71 : vector<8xf32> to vector<8x1xf32>
    %73 = tpu.reciprocal %72 : vector<8x1xf32> -> vector<8x1xf32>
    %74 = vector.broadcast %73 : vector<8x1xf32> to vector<8x8xf32>
    %75 = arith.mulf %70, %74 : vector<8x8xf32>
    %76 = arith.truncf %75 : vector<8x8xf32> to vector<8x8xbf16>
    %c0_39 = arith.constant 0 : index
    %c24_40 = arith.constant 24 : index
    %77 = vector.load %arg14[%c0_39, %c24_40] : memref<8x32xbf16, #tpu.memory_space<vmem>>, vector<8x8xbf16>
    %cst_41 = arith.constant dense<0.000000e+00> : vector<8x8xf32>
    %78 = tpu.matmul %76, %77, %cst_41 {dimension_numbers = #tpu.dot_dimension_numbers<[1], [0], [0], [1], [0, 0, 1, 1], [], []>} : vector<8x8xbf16>, vector<8x8xbf16>, vector<8x8xf32> -> vector<8x8xf32>
    %c0_42 = arith.constant 0 : index
    %c24_43 = arith.constant 24 : index
    %79 = vector.load %arg15[%c0_42, %c24_43] : memref<8x32xf32, #tpu.memory_space<vmem>>, vector<8x8xf32>
    tpu.vector_store %arg15[%c0_42, %c24_43], %78 {strides = array<i32>} : memref<8x32xf32, #tpu.memory_space<vmem>>, vector<8x8xf32>,
    %c0_44 = arith.constant 0 : index
    %c0_45 = arith.constant 0 : index
    %80 = vector.load %arg15[%c0_44, %c0_45] : memref<8x32xf32, #tpu.memory_space<vmem>>, vector<8x32xf32>
    %81 = arith.truncf %80 : vector<8x32xf32> to vector<8x32xbf16>
    %c0_46 = arith.constant 0 : index
    %c0_47 = arith.constant 0 : index
    %82 = vector.load %arg8[%c0_46, %c0_47] : memref<32x32xbf16, #tpu.memory_space<vmem>>, vector<32x32xbf16>
    %cst_48 = arith.constant dense<0.000000e+00> : vector<8x32xf32>
    %83 = tpu.matmul %81, %82, %cst_48 {dimension_numbers = #tpu.dot_dimension_numbers<[1], [0], [0], [1], [0, 0, 1, 1], [], []>} : vector<8x32xbf16>, vector<32x32xbf16>, vector<8x32xf32> -> vector<8x32xf32>
    %c0_49 = arith.constant 0 : index
    %c0_50 = arith.constant 0 : index
    %84 = vector.load %arg9[%c0_49, %c0_50] : memref<1x32xf32, #tpu.memory_space<vmem>>, vector<1x32xf32>
    %85 = vector.broadcast %84 : vector<1x32xf32> to vector<8x32xf32>
    %86 = arith.addf %83, %85 : vector<8x32xf32>
    %87 = arith.addf %4, %86 : vector<8x32xf32>
    %c0_51 = arith.constant 0 : index
    %c0_52 = arith.constant 0 : index
    %88 = vector.load %arg10[%c0_51, %c0_52] : memref<1x32xf32, #tpu.memory_space<vmem>>, vector<1x32xf32>
    %c0_53 = arith.constant 0 : index
    %c0_54 = arith.constant 0 : index
    %89 = vector.load %arg11[%c0_53, %c0_54] : memref<1x32xf32, #tpu.memory_space<vmem>>, vector<1x32xf32>
    %cst_55 = arith.constant dense<0.000000e+00> : vector<8xf32>
    %90 = vector.multi_reduction <add>, %87, %cst_55 [1] : vector<8x32xf32> to vector<8xf32>
    %91 = vector.shape_cast %90 : vector<8xf32> to vector<8x1xf32>
    %cst_56 = arith.constant 3.200000e+01 : f32
    %92 = vector.broadcast %cst_56 : f32 to vector<8x1xf32>
    %93 = arith.divf %91, %92 : vector<8x1xf32>
    %94 = vector.broadcast %93 : vector<8x1xf32> to vector<8x32xf32>
    %95 = arith.subf %87, %94 : vector<8x32xf32>
    %96 = arith.mulf %95, %95 : vector<8x32xf32>
    %cst_57 = arith.constant dense<0.000000e+00> : vector<8xf32>
    %97 = vector.multi_reduction <add>, %96, %cst_57 [1] : vector<8x32xf32> to vector<8xf32>
    %98 = vector.shape_cast %97 : vector<8xf32> to vector<8x1xf32>
    %cst_58 = arith.constant 0.0322580636 : f32
    %99 = vector.broadcast %cst_58 : f32 to vector<8x1xf32>
    %100 = arith.mulf %98, %99 : vector<8x1xf32>
    %cst_59 = arith.constant 9.99999974E-6 : f32
    %101 = vector.broadcast %cst_59 : f32 to vector<8x1xf32>
    %102 = arith.addf %100, %101 : vector<8x1xf32>
    %103 = math.rsqrt %102 : vector<8x1xf32>
    %104 = vector.broadcast %103 : vector<8x1xf32> to vector<8x32xf32>
    %105 = arith.mulf %95, %104 : vector<8x32xf32>
    %106 = vector.broadcast %88 : vector<1x32xf32> to vector<8x32xf32>
    %107 = arith.mulf %106, %105 : vector<8x32xf32>
    %108 = vector.broadcast %89 : vector<1x32xf32> to vector<8x32xf32>
    %109 = arith.addf %107, %108 : vector<8x32xf32>
    %c0_60 = arith.constant 0 : index
    %c0_61 = arith.constant 0 : index
    %c0_62 = arith.constant 0 : index
    %110 = vector.load %arg12[%c0_60, %c0_61, %c0_62] : memref<1x8x32xf32, #tpu.memory_space<vmem>>, vector<1x8x32xf32>
    %111 = vector.shape_cast %110 : vector<1x8x32xf32> to vector<8x32xf32>
    %112 = vector.shape_cast %109 : vector<8x32xf32> to vector<1x8x32xf32>
    tpu.vector_store %arg12[%c0_60, %c0_61, %c0_62], %112 {strides = array<i32>} : memref<1x8x32xf32, #tpu.memory_space<vmem>>, vector<1x8x32xf32>,
    return
  }
  func.func @transform_0(%arg0: i32, %arg1: i32) -> (i32, i32, i32) {
    %c0_i32 = arith.constant 0 : i32
    %c0_i32_0 = arith.constant 0 : i32
    %c0_i32_1 = arith.constant 0 : i32
    return %arg0, %c0_i32, %c0_i32_0 : i32, i32, i32
  }
  func.func @transform_1(%arg0: i32, %arg1: i32) -> (i32, i32, i32) {
    %c0_i32 = arith.constant 0 : i32
    %c0_i32_0 = arith.constant 0 : i32
    return %arg0, %arg1, %c0_i32 : i32, i32, i32
  }
  func.func @transform_2(%arg0: i32, %arg1: i32) -> (i32, i32) {
    %c0_i32 = arith.constant 0 : i32
    %c0_i32_0 = arith.constant 0 : i32
    %c0_i32_1 = arith.constant 0 : i32
    return %c0_i32, %c0_i32_0 : i32, i32
  }
  func.func @transform_3(%arg0: i32, %arg1: i32) -> (i32, i32) {
    %c0_i32 = arith.constant 0 : i32
    %c0_i32_0 = arith.constant 0 : i32
    %c0_i32_1 = arith.constant 0 : i32
    return %c0_i32, %c0_i32_0 : i32, i32
  }
  func.func @transform_4(%arg0: i32, %arg1: i32) -> (i32, i32) {
    %c0_i32 = arith.constant 0 : i32
    %c0_i32_0 = arith.constant 0 : i32
    %c0_i32_1 = arith.constant 0 : i32
    return %c0_i32, %c0_i32_0 : i32, i32
  }
  func.func @transform_5(%arg0: i32, %arg1: i32) -> (i32, i32) {
    %c0_i32 = arith.constant 0 : i32
    %c0_i32_0 = arith.constant 0 : i32
    %c0_i32_1 = arith.constant 0 : i32
    return %c0_i32, %c0_i32_0 : i32, i32
  }
  func.func @transform_6(%arg0: i32, %arg1: i32) -> (i32, i32) {
    %c0_i32 = arith.constant 0 : i32
    %c0_i32_0 = arith.constant 0 : i32
    %c0_i32_1 = arith.constant 0 : i32
    return %c0_i32, %c0_i32_0 : i32, i32
  }
  func.func @transform_7(%arg0: i32, %arg1: i32) -> (i32, i32) {
    %c0_i32 = arith.constant 0 : i32
    %c0_i32_0 = arith.constant 0 : i32
    %c0_i32_1 = arith.constant 0 : i32
    return %c0_i32, %c0_i32_0 : i32, i32
  }
  func.func @transform_8(%arg0: i32, %arg1: i32) -> (i32, i32) {
    %c0_i32 = arith.constant 0 : i32
    %c0_i32_0 = arith.constant 0 : i32
    %c0_i32_1 = arith.constant 0 : i32
    return %c0_i32, %c0_i32_0 : i32, i32
  }
  func.func @transform_9(%arg0: i32, %arg1: i32) -> (i32, i32) {
    %c0_i32 = arith.constant 0 : i32
    %c0_i32_0 = arith.constant 0 : i32
    %c0_i32_1 = arith.constant 0 : i32
    return %c0_i32, %c0_i32_0 : i32, i32
  }
  func.func @transform_10(%arg0: i32, %arg1: i32) -> (i32, i32, i32) {
    %c0_i32 = arith.constant 0 : i32
    %c0_i32_0 = arith.constant 0 : i32
    return %arg0, %arg1, %c0_i32 : i32, i32, i32
  }
}

</mosaic_0001>

<llo_original>
// kernel: tpu_custom_call.1
$region0: #{tpu_custom_call.1}
  #allocation0 [shape = 'u32[]', space=smem, size = 0x4, offset = 0x4, fixed_abs, tag = 'smem constant byte address 0x4 - core index']
  #allocation1 [shape = 'u32[144,128]{1,0:T(1,128)}', space=vmem, size = 0x12000, scoped, tag = 'internal scratch']
  #allocation2 [shape = 'bf16[8,32]{1,0:T(8,128)(2,1)}', space=vmem, size = 0x800, scoped, tag = 'scratch operand']
  #allocation3 [shape = 'bf16[8,32]{1,0:T(8,128)(2,1)}', space=vmem, size = 0x800, scoped, tag = 'scratch operand']
  #allocation4 [shape = 'f32[8,32]{1,0:T(8,128)}', space=vmem, size = 0x1000, scoped, tag = 'scratch operand']
  %s0 = inlined_call_operand.hbm [shape: f32[2,8,32], index: 0, kind: input, shape index: {}]
  %s1 = inlined_call_operand.hbm [shape: f32[2,8,32], index: 1, kind: input, shape index: {}]
  %s2 = inlined_call_operand.hbm [shape: bf16[32,32], index: 2, kind: input, shape index: {}]
  %s3 = inlined_call_operand.hbm [shape: f32[1,32], index: 3, kind: input, shape index: {}]
  %s4 = inlined_call_operand.hbm [shape: bf16[32,64], index: 4, kind: input, shape index: {}]
  %s5 = inlined_call_operand.hbm [shape: f32[1,64], index: 5, kind: input, shape index: {}]
  %s6 = inlined_call_operand.hbm [shape: bf16[32,32], index: 6, kind: input, shape index: {}]
  %s7 = inlined_call_operand.hbm [shape: f32[1,32], index: 7, kind: input, shape index: {}]
  %s8 = inlined_call_operand.hbm [shape: f32[1,32], index: 8, kind: input, shape index: {}]
  %s9 = inlined_call_operand.hbm [shape: f32[1,32], index: 9, kind: input, shape index: {}]
  %s10 = inlined_call_operand.hbm [shape: f32[2,8,32], index: 10, kind: output, shape index: {}]
  %s11 = sld [smem:[#allocation0]]
  $region117: #{tpu_custom_call.1} parent=0
    _
  %s13 = ssub.s32 1, %s11
  %s14 = scalar_select 0, %s13, %s11
  $region1: #{tpu_custom_call.1} parent=0
    #allocation5 [shape = 'u8[8192]{0}', space=vmem, size = 0x2000, scoped, tag = 'input window, operand 0']
    #allocation6 [shape = 's32[2]{0}', space=sflag, size = 0x8, scoped, tag = 'scoped memory for tpu_custom_call.1']
    #allocation7 [shape = 's32[2]{0}', space=sflag, size = 0x8, scoped, tag = 'scoped memory for tpu_custom_call.1']
    #allocation8 [shape = 'u8[8192]{0}', space=vmem, size = 0x2000, scoped, tag = 'input window, operand 1']
    #allocation9 [shape = 's32[2]{0}', space=sflag, size = 0x8, scoped, tag = 'scoped memory for tpu_custom_call.1']
    #allocation10 [shape = 'u8[8192]{0}', space=vmem, size = 0x2000, scoped, tag = 'input window, operand 2, single buffered']
    #allocation11 [shape = 'u8[512]{0}', space=vmem, size = 0x400, scoped, tag = 'input window, operand 3, single buffered']
    #allocation12 [shape = 's32[1]{0}', space=sflag, size = 0x4, scoped, tag = 'scoped memory for tpu_custom_call.1']
    #allocation13 [shape = 'u8[8192]{0}', space=vmem, size = 0x2000, scoped, tag = 'input window, operand 4, single buffered']
    #allocation14 [shape = 'u8[512]{0}', space=vmem, size = 0x400, scoped, tag = 'input window, operand 5, single buffered']
    #allocation15 [shape = 's32[1]{0}', space=sflag, size = 0x4, scoped, tag = 'scoped memory for tpu_custom_call.1']
    #allocation16 [shape = 'u8[8192]{0}', space=vmem, size = 0x2000, scoped, tag = 'input window, operand 6, single buffered']
    #allocation17 [shape = 'u8[512]{0}', space=vmem, size = 0x400, scoped, tag = 'input window, operand 7, single buffered']
    #allocation18 [shape = 's32[1]{0}', space=sflag, size = 0x4, scoped, tag = 'scoped memory for tpu_custom_call.1']
    #allocation19 [shape = 'u8[512]{0}', space=vmem, size = 0x400, scoped, tag = 'input window, operand 8, single buffered']
    #allocation20 [shape = 'u8[512]{0}', space=vmem, size = 0x400, scoped, tag = 'input window, operand 9, single buffered']
    #allocation21 [shape = 's32[1]{0}', space=sflag, size = 0x4, scoped, tag = 'scoped memory for tpu_custom_call.1']
    #allocation22 [shape = 'u8[8192]{0}', space=vmem, size = 0x2000, scoped, tag = 'output window, operand 0']
    %15 = vsyncpa [#allocation6], 0
    %s16 = scalar_lea.sflag [#allocation6], 1
    %17 = vsyncpa %s16, 0
    %18 = vsyncpa [#allocation9], 0
    %s19 = scalar_lea.sflag [#allocation9], 1
    %20 = vsyncpa %s19, 0
    %21 = vsyncpa [#allocation12], 0
    %22 = vsyncpa [#allocation15], 0
    %23 = vsyncpa [#allocation18], 0
    %24 = vsyncpa [#allocation21], 0
    %25 = vsyncpa [#allocation7], 0
    %s26 = scalar_lea.sflag [#allocation7], 1
    %27 = vsyncpa %s26, 0
    loop: start=0, step=1, limit=4
    $region2: #{tpu_custom_call.1} parent=1 // loop_pre_header
      _
    $region3: #{tpu_custom_call.1} parent=1 // loop_header
      %s29 = sphi 0, %s33
      %p30 = scmp.ge.s32.totalorder %s29, 4
      %s36 = sphi 0, %s48
      %s37 = sphi 0, %s44
      %s38 = sphi 0, %s36
      %s39 = sphi 0, %s37
      %s40 = sphi 0, %s38
      %s41 = sphi 0, %s39
      %s51 = sphi 0, %s53
      %s54 = sphi 0, %s51
      %s55 = sphi 0, %s54
      %s71 = sphi 0, %s55
      %s79 = sphi 0, %s81
      %s82 = sphi 0, %s79
      %s83 = sphi 0, %s82
      %s99 = sphi 0, %s83
      %s103 = sphi 0, %s103
      %s105 = sphi 0, %s103
      %s106 = sphi 0, %s105
      %s120 = sphi 0, %s106
      %s124 = sphi 0, %s124
      %s126 = sphi 0, %s124
      %s127 = sphi 0, %s126
      %s141 = sphi 0, %s127
      %s145 = sphi 0, %s145
      %s147 = sphi 0, %s145
      %s148 = sphi 0, %s147
      %s162 = sphi 0, %s148
      %s166 = sphi 0, %s166
      %s168 = sphi 0, %s166
      %s169 = sphi 0, %s168
      %s183 = sphi 0, %s169
      %s187 = sphi 0, %s187
      %s189 = sphi 0, %s187
      %s190 = sphi 0, %s189
      %s204 = sphi 0, %s190
      %s208 = sphi 0, %s208
      %s210 = sphi 0, %s208
      %s211 = sphi 0, %s210
      %s225 = sphi 0, %s211
      %s229 = sphi 0, %s229
      %s231 = sphi 0, %s229
      %s232 = sphi 0, %s231
      %s246 = sphi 0, %s232
      %s250 = sphi 0, %s250
      %s252 = sphi 0, %s250
      %s253 = sphi 0, %s252
      %s267 = sphi 0, %s253
      %s275 = sphi 0, %s277
      %s278 = sphi 0, %s275
      %s279 = sphi 0, %s278
      %s295 = sphi 0, %s279
    $region4: #{tpu_custom_call.1} parent=1 // loop_header_branch
      %32 = sbr.rel (%p30) target = $region8
    $region5: #{tpu_custom_call.1} parent=1 // loop_body
      %s34 = ssub.s32 %s29, 1
      %s35 = ssub.s32 %s29, 2
      %s42 = sadd.s32 1, %s37
      %p43 = scmp.ge.s32.totalorder %s42, 1
      %s44 = scalar_select %p43, 0, %s42
      %s45 = sadd.s32 1, %s36
      %s46 = scalar_select %p43, %s45, %s36
      %p47 = scmp.ge.s32.totalorder %s46, 2
      %s48 = scalar_select %p47, 0, %s46
      %s49 = ssub.s32 %s36, %s48
      %p50 = scmp.eq.s32.totalorder %s49, 0
      %s52 = sadd.s32 %s51, 1
      %s53 = scalar_select %p50, %s51, %s52
      %p56 = pneg %p50
      %p57 = scmp.eq.s32.totalorder %s29, 1
      %p58 = por %p56, %p57
      %p59 = scmp.ne.s32.totalorder %s51, %s54
      %p60 = scmp.eq.s32.totalorder %s29, 0
      %p61 = por %p59, %p60
      %p62 = scmp.ne.s32.totalorder %s51, %s54
      %p63 = scmp.eq.s32.totalorder %s34, 1
      %p64 = por %p62, %p63
      %p65 = scmp.ne.s32.totalorder %s54, %s55
      %p66 = scmp.eq.s32.totalorder %s34, 0
      %p67 = por %p65, %p66
      %p68 = scmp.ne.s32.totalorder %s54, %s55
      %p69 = scmp.eq.s32.totalorder %s35, 1
      %p70 = por %p68, %p69
      %p72 = scmp.ne.s32.totalorder %s55, %s71
      %p73 = scmp.eq.s32.totalorder %s35, 0
      %p74 = por %p72, %p73
      %s75 = ssub.s32 %s36, %s48
      %s76 = ssub.s32 %s37, %s44
      %s77 = sor.u32 %s75, %s76
      %p78 = scmp.eq.s32.totalorder %s77, 0
      %s80 = sadd.s32 %s79, 1
      %s81 = scalar_select %p78, %s79, %s80
      %p84 = pneg %p78
      %p85 = scmp.eq.s32.totalorder %s29, 1
      %p86 = por %p84, %p85
      %p87 = scmp.ne.s32.totalorder %s79, %s82
      %p88 = scmp.eq.s32.totalorder %s29, 0
      %p89 = por %p87, %p88
      %p90 = scmp.ne.s32.totalorder %s79, %s82
      %p91 = scmp.eq.s32.totalorder %s34, 1
      %p92 = por %p90, %p91
      %p93 = scmp.ne.s32.totalorder %s82, %s83
      %p94 = scmp.eq.s32.totalorder %s34, 0
      %p95 = por %p93, %p94
      %p96 = scmp.ne.s32.totalorder %s82, %s83
      %p97 = scmp.eq.s32.totalorder %s35, 1
      %p98 = por %p96, %p97
      %p100 = scmp.ne.s32.totalorder %s83, %s99
      %p101 = scmp.eq.s32.totalorder %s35, 0
      %p102 = por %p100, %p101
      %s104 = sadd.s32 %s103, 1
      %p107 = scmp.eq.s32.totalorder %s29, 1
      %p108 = scmp.ne.s32.totalorder %s103, %s105
      %p109 = scmp.eq.s32.totalorder %s29, 0
      %p110 = por %p108, %p109
      %p111 = scmp.ne.s32.totalorder %s103, %s105
      %p112 = scmp.eq.s32.totalorder %s34, 1
      %p113 = por %p111, %p112
      %p114 = scmp.ne.s32.totalorder %s105, %s106
      %p115 = scmp.eq.s32.totalorder %s34, 0
      %p116 = por %p114, %p115
      %p117 = scmp.ne.s32.totalorder %s105, %s106
      %p118 = scmp.eq.s32.totalorder %s35, 1
      %p119 = por %p117, %p118
      %p121 = scmp.ne.s32.totalorder %s106, %s120
      %p122 = scmp.eq.s32.totalorder %s35, 0
      %p123 = por %p121, %p122
      %s125 = sadd.s32 %s124, 1
      %p128 = scmp.eq.s32.totalorder %s29, 1
      %p129 = scmp.ne.s32.totalorder %s124, %s126
      %p130 = scmp.eq.s32.totalorder %s29, 0
      %p131 = por %p129, %p130
      %p132 = scmp.ne.s32.totalorder %s124, %s126
      %p133 = scmp.eq.s32.totalorder %s34, 1
      %p134 = por %p132, %p133
      %p135 = scmp.ne.s32.totalorder %s126, %s127
      %p136 = scmp.eq.s32.totalorder %s34, 0
      %p137 = por %p135, %p136
      %p138 = scmp.ne.s32.totalorder %s126, %s127
      %p139 = scmp.eq.s32.totalorder %s35, 1
      %p140 = por %p138, %p139
      %p142 = scmp.ne.s32.totalorder %s127, %s141
      %p143 = scmp.eq.s32.totalorder %s35, 0
      %p144 = por %p142, %p143
      %s146 = sadd.s32 %s145, 1
      %p149 = scmp.eq.s32.totalorder %s29, 1
      %p150 = scmp.ne.s32.totalorder %s145, %s147
      %p151 = scmp.eq.s32.totalorder %s29, 0
      %p152 = por %p150, %p151
      %p153 = scmp.ne.s32.totalorder %s145, %s147
      %p154 = scmp.eq.s32.totalorder %s34, 1
      %p155 = por %p153, %p154
      %p156 = scmp.ne.s32.totalorder %s147, %s148
      %p157 = scmp.eq.s32.totalorder %s34, 0
      %p158 = por %p156, %p157
      %p159 = scmp.ne.s32.totalorder %s147, %s148
      %p160 = scmp.eq.s32.totalorder %s35, 1
      %p161 = por %p159, %p160
      %p163 = scmp.ne.s32.totalorder %s148, %s162
      %p164 = scmp.eq.s32.totalorder %s35, 0
      %p165 = por %p163, %p164
      %s167 = sadd.s32 %s166, 1
      %p170 = scmp.eq.s32.totalorder %s29, 1
      %p171 = scmp.ne.s32.totalorder %s166, %s168
      %p172 = scmp.eq.s32.totalorder %s29, 0
      %p173 = por %p171, %p172
      %p174 = scmp.ne.s32.totalorder %s166, %s168
      %p175 = scmp.eq.s32.totalorder %s34, 1
      %p176 = por %p174, %p175
      %p177 = scmp.ne.s32.totalorder %s168, %s169
      %p178 = scmp.eq.s32.totalorder %s34, 0
      %p179 = por %p177, %p178
      %p180 = scmp.ne.s32.totalorder %s168, %s169
      %p181 = scmp.eq.s32.totalorder %s35, 1
      %p182 = por %p180, %p181
      %p184 = scmp.ne.s32.totalorder %s169, %s183
      %p185 = scmp.eq.s32.totalorder %s35, 0
      %p186 = por %p184, %p185
      %s188 = sadd.s32 %s187, 1
      %p191 = scmp.eq.s32.totalorder %s29, 1
      %p192 = scmp.ne.s32.totalorder %s187, %s189
      %p193 = scmp.eq.s32.totalorder %s29, 0
      %p194 = por %p192, %p193
      %p195 = scmp.ne.s32.totalorder %s187, %s189
      %p196 = scmp.eq.s32.totalorder %s34, 1
      %p197 = por %p195, %p196
      %p198 = scmp.ne.s32.totalorder %s189, %s190
      %p199 = scmp.eq.s32.totalorder %s34, 0
      %p200 = por %p198, %p199
      %p201 = scmp.ne.s32.totalorder %s189, %s190
      %p202 = scmp.eq.s32.totalorder %s35, 1
      %p203 = por %p201, %p202
      %p205 = scmp.ne.s32.totalorder %s190, %s204
      %p206 = scmp.eq.s32.totalorder %s35, 0
      %p207 = por %p205, %p206
      %s209 = sadd.s32 %s208, 1
      %p212 = scmp.eq.s32.totalorder %s29, 1
      %p213 = scmp.ne.s32.totalorder %s208, %s210
      %p214 = scmp.eq.s32.totalorder %s29, 0
      %p215 = por %p213, %p214
      %p216 = scmp.ne.s32.totalorder %s208, %s210
      %p217 = scmp.eq.s32.totalorder %s34, 1
      %p218 = por %p216, %p217
      %p219 = scmp.ne.s32.totalorder %s210, %s211
      %p220 = scmp.eq.s32.totalorder %s34, 0
      %p221 = por %p219, %p220
      %p222 = scmp.ne.s32.totalorder %s210, %s211
      %p223 = scmp.eq.s32.totalorder %s35, 1
      %p224 = por %p222, %p223
      %p226 = scmp.ne.s32.totalorder %s211, %s225
      %p227 = scmp.eq.s32.totalorder %s35, 0
      %p228 = por %p226, %p227
      %s230 = sadd.s32 %s229, 1
      %p233 = scmp.eq.s32.totalorder %s29, 1
      %p234 = scmp.ne.s32.totalorder %s229, %s231
      %p235 = scmp.eq.s32.totalorder %s29, 0
      %p236 = por %p234, %p235
      %p237 = scmp.ne.s32.totalorder %s229, %s231
      %p238 = scmp.eq.s32.totalorder %s34, 1
      %p239 = por %p237, %p238
      %p240 = scmp.ne.s32.totalorder %s231, %s232
      %p241 = scmp.eq.s32.totalorder %s34, 0
      %p242 = por %p240, %p241
      %p243 = scmp.ne.s32.totalorder %s231, %s232
      %p244 = scmp.eq.s32.totalorder %s35, 1
      %p245 = por %p243, %p244
      %p247 = scmp.ne.s32.totalorder %s232, %s246
      %p248 = scmp.eq.s32.totalorder %s35, 0
      %p249 = por %p247, %p248
      %s251 = sadd.s32 %s250, 1
      %p254 = scmp.eq.s32.totalorder %s29, 1
      %p255 = scmp.ne.s32.totalorder %s250, %s252
      %p256 = scmp.eq.s32.totalorder %s29, 0
      %p257 = por %p255, %p256
      %p258 = scmp.ne.s32.totalorder %s250, %s252
      %p259 = scmp.eq.s32.totalorder %s34, 1
      %p260 = por %p258, %p259
      %p261 = scmp.ne.s32.totalorder %s252, %s253
      %p262 = scmp.eq.s32.totalorder %s34, 0
      %p263 = por %p261, %p262
      %p264 = scmp.ne.s32.totalorder %s252, %s253
      %p265 = scmp.eq.s32.totalorder %s35, 1
      %p266 = por %p264, %p265
      %p268 = scmp.ne.s32.totalorder %s253, %s267
      %p269 = scmp.eq.s32.totalorder %s35, 0
      %p270 = por %p268, %p269
      %s271 = ssub.s32 %s36, %s48
      %s272 = ssub.s32 %s37, %s44
      %s273 = sor.u32 %s271, %s272
      %p274 = scmp.eq.s32.totalorder %s273, 0
      %s276 = sadd.s32 %s275, 1
      %s277 = scalar_select %p274, %s275, %s276
      %p280 = pneg %p274
      %p281 = scmp.eq.s32.totalorder %s29, 1
      %p282 = por %p280, %p281
      %p283 = scmp.ne.s32.totalorder %s275, %s278
      %p284 = scmp.eq.s32.totalorder %s29, 0
      %p285 = por %p283, %p284
      %p286 = scmp.ne.s32.totalorder %s275, %s278
      %p287 = scmp.eq.s32.totalorder %s34, 1
      %p288 = por %p286, %p287
      %p289 = scmp.ne.s32.totalorder %s278, %s279
      %p290 = scmp.eq.s32.totalorder %s34, 0
      %p291 = por %p289, %p290
      %p292 = scmp.ne.s32.totalorder %s278, %s279
      %p293 = scmp.eq.s32.totalorder %s35, 1
      %p294 = por %p292, %p293
      %p296 = scmp.ne.s32.totalorder %s279, %s295
      %p297 = scmp.eq.s32.totalorder %s35, 0
      %p298 = por %p296, %p297
      %p299 = scmp.le.s32.totalorder 1, %s29
      %p300 = scmp.lt.s32.totalorder %s29, 3
      %p301 = pnand %p299, %p300
      %p302 = pneg %p301
      // Predicated region
      $region9: #{tpu_custom_call.1} parent=5 // pred_check
        _
      $region10: #{tpu_custom_call.1} parent=5 // pred_check_branch
        %304 = sbr.rel (%p301) target = $region12
      $region11: #{tpu_custom_call.1} parent=5 // pred_region
        %s305 = ssub.s32 %s29, 1
        // Predicated region
        $region13: #{tpu_custom_call.1} parent=11 // pred_check
          %p306 = pneg %p116
        $region14: #{tpu_custom_call.1} parent=11 // pred_check_branch
          %308 = sbr.rel (%p306) target = $region16
        $region15: #{tpu_custom_call.1} parent=11 // pred_region
          %s310 = ssub.s32 256, 256
          %311 = vsyncadd [#allocation9], %s310
          %s312 = sshll.u32 [#allocation10], 4
          %s313 = int_to_ptr.vmem [resolvable:$true] %s312
          %318 = dma.hbm_to_vmem [thread:$0]  %s2, 256, %s313, [#allocation9], 64, 64, 4
        $region16: #{tpu_custom_call.1} parent=11 // pred_fallthru
          _
        // Predicated region
        $region17: #{tpu_custom_call.1} parent=11 // pred_check
          %p319 = pneg %p137
        $region18: #{tpu_custom_call.1} parent=11 // pred_check_branch
          %321 = sbr.rel (%p319) target = $region20
        $region19: #{tpu_custom_call.1} parent=11 // pred_region
          %s323 = ssub.s32 16, 16
          %324 = vsyncadd [#allocation12], %s323
          %s326 = sshll.u32 [#allocation11], 4
          %s327 = int_to_ptr.vmem [resolvable:$true] %s326
          %329 = dma.hbm_to_vmem [thread:$0]  %s3, 16, %s327, [#allocation12]
        $region20: #{tpu_custom_call.1} parent=11 // pred_fallthru
          _
        // Predicated region
        $region21: #{tpu_custom_call.1} parent=11 // pred_check
          %p330 = pneg %p158
        $region22: #{tpu_custom_call.1} parent=11 // pred_check_branch
          %332 = sbr.rel (%p330) target = $region24
        $region23: #{tpu_custom_call.1} parent=11 // pred_region
          %s334 = ssub.s32 256, 256
          %335 = vsyncadd [#allocation12], %s334
          %s336 = sshll.u32 [#allocation13], 4
          %s337 = int_to_ptr.vmem [resolvable:$true] %s336
          %342 = dma.hbm_to_vmem [thread:$0]  %s4, 256, %s337, [#allocation12], 64, 64, 4
        $region24: #{tpu_custom_call.1} parent=11 // pred_fallthru
          _
        // Predicated region
        $region25: #{tpu_custom_call.1} parent=11 // pred_check
          %p343 = pneg %p179
        $region26: #{tpu_custom_call.1} parent=11 // pred_check_branch
          %345 = sbr.rel (%p343) target = $region28
        $region27: #{tpu_custom_call.1} parent=11 // pred_region
          %s347 = ssub.s32 16, 16
          %348 = vsyncadd [#allocation15], %s347
          %s350 = sshll.u32 [#allocation14], 4
          %s351 = int_to_ptr.vmem [resolvable:$true] %s350
          %353 = dma.hbm_to_vmem [thread:$0]  %s5, 16, %s351, [#allocation15]
        $region28: #{tpu_custom_call.1} parent=11 // pred_fallthru
          _
        // Predicated region
        $region29: #{tpu_custom_call.1} parent=11 // pred_check
          %p354 = pneg %p200
        $region30: #{tpu_custom_call.1} parent=11 // pred_check_branch
          %356 = sbr.rel (%p354) target = $region32
        $region31: #{tpu_custom_call.1} parent=11 // pred_region
          %s358 = ssub.s32 256, 256
          %359 = vsyncadd [#allocation15], %s358
          %s360 = sshll.u32 [#allocation16], 4
          %s361 = int_to_ptr.vmem [resolvable:$true] %s360
          %366 = dma.hbm_to_vmem [thread:$0]  %s6, 256, %s361, [#allocation15], 64, 64, 4
        $region32: #{tpu_custom_call.1} parent=11 // pred_fallthru
          _
        // Predicated region
        $region33: #{tpu_custom_call.1} parent=11 // pred_check
          %p367 = pneg %p221
        $region34: #{tpu_custom_call.1} parent=11 // pred_check_branch
          %369 = sbr.rel (%p367) target = $region36
        $region35: #{tpu_custom_call.1} parent=11 // pred_region
          %s371 = ssub.s32 16, 16
          %372 = vsyncadd [#allocation18], %s371
          %s374 = sshll.u32 [#allocation17], 4
          %s375 = int_to_ptr.vmem [resolvable:$true] %s374
          %377 = dma.hbm_to_vmem [thread:$0]  %s7, 16, %s375, [#allocation18]
        $region36: #{tpu_custom_call.1} parent=11 // pred_fallthru
          _
        // Predicated region
        $region37: #{tpu_custom_call.1} parent=11 // pred_check
          %p378 = pneg %p242
        $region38: #{tpu_custom_call.1} parent=11 // pred_check_branch
          %380 = sbr.rel (%p378) target = $region40
        $region39: #{tpu_custom_call.1} parent=11 // pred_region
          %s382 = ssub.s32 16, 16
          %383 = vsyncadd [#allocation18], %s382
          %s385 = sshll.u32 [#allocation19], 4
          %s386 = int_to_ptr.vmem [resolvable:$true] %s385
          %388 = dma.hbm_to_vmem [thread:$0]  %s8, 16, %s386, [#allocation18]
        $region40: #{tpu_custom_call.1} parent=11 // pred_fallthru
          _
        // Predicated region
        $region41: #{tpu_custom_call.1} parent=11 // pred_check
          %p389 = pneg %p263
        $region42: #{tpu_custom_call.1} parent=11 // pred_check_branch
          %391 = sbr.rel (%p389) target = $region44
        $region43: #{tpu_custom_call.1} parent=11 // pred_region
          %s393 = ssub.s32 16, 16
          %394 = vsyncadd [#allocation21], %s393
          %s396 = sshll.u32 [#allocation20], 4
          %s397 = int_to_ptr.vmem [resolvable:$true] %s396
          %399 = dma.hbm_to_vmem [thread:$0]  %s9, 16, %s397, [#allocation21]
        $region44: #{tpu_custom_call.1} parent=11 // pred_fallthru
          _
      $region12: #{tpu_custom_call.1} parent=5 // pred_fallthru
        _
      %p400 = scmp.lt.s32.totalorder %s29, 2
      // Predicated region
      $region45: #{tpu_custom_call.1} parent=5 // pred_check
        %p401 = pneg %p400
      $region46: #{tpu_custom_call.1} parent=5 // pred_check_branch
        %403 = sbr.rel (%p401) target = $region48
      $region47: #{tpu_custom_call.1} parent=5 // pred_region
        // Predicated region
        $region49: #{tpu_custom_call.1} parent=47 // pred_check
          %p404 = pneg %p61
        $region50: #{tpu_custom_call.1} parent=47 // pred_check_branch
          %406 = sbr.rel (%p404) target = $region52
        $region51: #{tpu_custom_call.1} parent=47 // pred_region
          %s407 = sand.u32 %s51, 1
          %s408 = scalar_lea.sflag [#allocation6], %s407
          %s409 = sand.u32 %s51, 1
          %s410 = smul.addr %s409, 8
          %s411 = scalar_lea.vmem [#allocation5], %s410
          %s413 = ssub.s32 128, 128
          %414 = vsyncadd %s408, %s413
          %s415 = smul.addr %s36, 128
          %s416 = scalar_lea.hbm %s0, %s415
          %s418 = sshll.u32 %s411, 4
          %s419 = int_to_ptr.vmem [resolvable:$true] %s418
          %421 = dma.hbm_to_vmem [thread:$0]  %s416, 128, %s419, %s408
        $region52: #{tpu_custom_call.1} parent=47 // pred_fallthru
          _
        // Predicated region
        $region53: #{tpu_custom_call.1} parent=47 // pred_check
          %p422 = pneg %p89
        $region54: #{tpu_custom_call.1} parent=47 // pred_check_branch
          %424 = sbr.rel (%p422) target = $region56
        $region55: #{tpu_custom_call.1} parent=47 // pred_region
          %s425 = sand.u32 %s29, 1
          %s426 = scalar_lea.sflag [#allocation9], %s425
          %s427 = sand.u32 %s79, 1
          %s428 = smul.addr %s427, 8
          %s429 = scalar_lea.vmem [#allocation8], %s428
          %s431 = ssub.s32 128, 128
          %432 = vsyncadd %s426, %s431
          %s433 = sadd.s32 %s37, %s36
          %s434 = smul.addr %s433, 128
          %s435 = scalar_lea.hbm %s1, %s434
          %s437 = sshll.u32 %s429, 4
          %s438 = int_to_ptr.vmem [resolvable:$true] %s437
          %440 = dma.hbm_to_vmem [thread:$0]  %s435, 128, %s438, %s426
        $region56: #{tpu_custom_call.1} parent=47 // pred_fallthru
          _
      $region48: #{tpu_custom_call.1} parent=5 // pred_fallthru
        _
      %p441 = scmp.le.s32.totalorder 1, %s29
      %p442 = scmp.lt.s32.totalorder %s29, 3
      %p443 = pnand %p441, %p442
      %p444 = pneg %p443
      // Predicated region
      $region57: #{tpu_custom_call.1} parent=5 // pred_check
        _
      $region58: #{tpu_custom_call.1} parent=5 // pred_check_branch
        %446 = sbr.rel (%p443) target = $region60
      $region59: #{tpu_custom_call.1} parent=5 // pred_region
        %s447 = ssub.s32 %s29, 1
        %s448 = sand.u32 %s54, 1
        %s449 = scalar_lea.sflag [#allocation6], %s448
        %s450 = sand.u32 %s54, 1
        %s451 = smul.addr %s450, 8
        %s452 = scalar_lea.vmem [#allocation5], %s451
        // Predicated region
        $region61: #{tpu_custom_call.1} parent=59 // pred_check
          %p453 = pneg %p67
        $region62: #{tpu_custom_call.1} parent=59 // pred_check_branch
          %455 = sbr.rel (%p453) target = $region64
        $region63: #{tpu_custom_call.1} parent=59 // pred_region
          %456 = dma.done %s449, 128
        $region64: #{tpu_custom_call.1} parent=59 // pred_fallthru
          _
        %s457 = sand.u32 %s34, 1
        %s458 = scalar_lea.sflag [#allocation9], %s457
        %s459 = sand.u32 %s82, 1
        %s460 = smul.addr %s459, 8
        %s461 = scalar_lea.vmem [#allocation8], %s460
        // Predicated region
        $region65: #{tpu_custom_call.1} parent=59 // pred_check
          %p462 = pneg %p95
        $region66: #{tpu_custom_call.1} parent=59 // pred_check_branch
          %464 = sbr.rel (%p462) target = $region68
        $region67: #{tpu_custom_call.1} parent=59 // pred_region
          %465 = dma.done %s458, 128
        $region68: #{tpu_custom_call.1} parent=59 // pred_fallthru
          _
        // Predicated region
        $region69: #{tpu_custom_call.1} parent=59 // pred_check
          %p466 = pneg %p116
        $region70: #{tpu_custom_call.1} parent=59 // pred_check_branch
          %468 = sbr.rel (%p466) target = $region72
        $region71: #{tpu_custom_call.1} parent=59 // pred_region
          %469 = dma.done [#allocation9], 256
        $region72: #{tpu_custom_call.1} parent=59 // pred_fallthru
          _
        // Predicated region
        $region73: #{tpu_custom_call.1} parent=59 // pred_check
          %p470 = pneg %p137
        $region74: #{tpu_custom_call.1} parent=59 // pred_check_branch
          %472 = sbr.rel (%p470) target = $region76
        $region75: #{tpu_custom_call.1} parent=59 // pred_region
          %473 = dma.done [#allocation12], 16
        $region76: #{tpu_custom_call.1} parent=59 // pred_fallthru
          _
        // Predicated region
        $region77: #{tpu_custom_call.1} parent=59 // pred_check
          %p474 = pneg %p158
        $region78: #{tpu_custom_call.1} parent=59 // pred_check_branch
          %476 = sbr.rel (%p474) target = $region80
        $region79: #{tpu_custom_call.1} parent=59 // pred_region
          %477 = dma.done [#allocation12], 256
        $region80: #{tpu_custom_call.1} parent=59 // pred_fallthru
          _
        // Predicated region
        $region81: #{tpu_custom_call.1} parent=59 // pred_check
          %p478 = pneg %p179
        $region82: #{tpu_custom_call.1} parent=59 // pred_check_branch
          %480 = sbr.rel (%p478) target = $region84
        $region83: #{tpu_custom_call.1} parent=59 // pred_region
          %481 = dma.done [#allocation15], 16
        $region84: #{tpu_custom_call.1} parent=59 // pred_fallthru
          _
        // Predicated region
        $region85: #{tpu_custom_call.1} parent=59 // pred_check
          %p482 = pneg %p200
        $region86: #{tpu_custom_call.1} parent=59 // pred_check_branch
          %484 = sbr.rel (%p482) target = $region88
        $region87: #{tpu_custom_call.1} parent=59 // pred_region
          %485 = dma.done [#allocation15], 256
        $region88: #{tpu_custom_call.1} parent=59 // pred_fallthru
          _
        // Predicated region
        $region89: #{tpu_custom_call.1} parent=59 // pred_check
          %p486 = pneg %p221
        $region90: #{tpu_custom_call.1} parent=59 // pred_check_branch
          %488 = sbr.rel (%p486) target = $region92
        $region91: #{tpu_custom_call.1} parent=59 // pred_region
          %489 = dma.done [#allocation18], 16
        $region92: #{tpu_custom_call.1} parent=59 // pred_fallthru
          _
        // Predicated region
        $region93: #{tpu_custom_call.1} parent=59 // pred_check
          %p490 = pneg %p242
        $region94: #{tpu_custom_call.1} parent=59 // pred_check_branch
          %492 = sbr.rel (%p490) target = $region96
        $region95: #{tpu_custom_call.1} parent=59 // pred_region
          %493 = dma.done [#allocation18], 16
        $region96: #{tpu_custom_call.1} parent=59 // pred_fallthru
          _
        // Predicated region
        $region97: #{tpu_custom_call.1} parent=59 // pred_check
          %p494 = pneg %p263
        $region98: #{tpu_custom_call.1} parent=59 // pred_check_branch
          %496 = sbr.rel (%p494) target = $region100
        $region99: #{tpu_custom_call.1} parent=59 // pred_region
          %497 = dma.done [#allocation21], 16
        $region100: #{tpu_custom_call.1} parent=59 // pred_fallthru
          _
        %s498 = sand.u32 %s54, 1
        %s499 = scalar_lea.sflag [#allocation6], %s498
        %s500 = sand.u32 %s54, 1
        %s501 = smul.addr %s500, 8
        %s502 = scalar_lea.vmem [#allocation5], %s501
        %p503 = pneg %p67
        %p504 = pneg %p64
        %s505 = sand.u32 %s34, 1
        %s506 = scalar_lea.sflag [#allocation9], %s505
        %s507 = sand.u32 %s82, 1
        %s508 = smul.addr %s507, 8
        %s509 = scalar_lea.vmem [#allocation8], %s508
        %p510 = pneg %p95
        %p511 = pneg %p92
        %p512 = pneg %p116
        %p513 = pneg %p113
        %p514 = pneg %p137
        %p515 = pneg %p134
        %p516 = pneg %p158
        %p517 = pneg %p155
        %p518 = pneg %p179
        %p519 = pneg %p176
        %p520 = pneg %p200
        %p521 = pneg %p197
        %p522 = pneg %p221
        %p523 = pneg %p218
        %p524 = pneg %p242
        %p525 = pneg %p239
        %p526 = pneg %p263
        %p527 = pneg %p260
        %p528 = pneg %p291
        %p529 = pneg %p288
        %s530 = sand.u32 %s278, 1
        %s531 = scalar_lea.sflag [#allocation7], %s530
        %s532 = sand.u32 %s278, 1
        %s533 = smul.addr %s532, 8
        %s534 = scalar_lea.vmem [#allocation22], %s533
        %p536 = scmp.eq.s32.totalorder %s39, 0
        // Predicated region
        $region101: #{tpu_custom_call.1} parent=59 // pred_check
          %p537 = pneg %p536
        $region102: #{tpu_custom_call.1} parent=59 // pred_check_branch
          %539 = sbr.rel (%p537) target = $region104
        $region103: #{tpu_custom_call.1} parent=59 // pred_region
          %v540 = vld [vmem:[%s452] sm:$0xff]
          %v541 = vpack.c.bf16 %v540, %v540
          %v542 = vld [vmem:[#allocation13] sm:$0xf]
          %v543 = vld [vmem:[#allocation13 + $0x4] sm:$0xf]
          %v544 = vld [vmem:[#allocation13 + $0x8] sm:$0xf]
          %v545 = vld [vmem:[#allocation13 + $0xc] sm:$0xf]
          %v546 = vld [vmem:[#allocation14] sm:$0x1]
          %v548 = vlaneseq
          %v549 = vshrl.u32 %v548, 7
          %v550 = vsub.s32 0, %v549
          %v551 = vrot.slane %v546, %v550
          %v557 = vunpack.c.l.b16 %v542
          %v558 = vunpack.c.l.b16 %v543
          %v559 = vunpack.c.l.b16 %v544
          %v560 = vunpack.c.l.b16 %v545
          %v561 = vpack.c.b16 %v558, %v557
          %v562 = vpack.c.b16 %v560, %v559
          %vm565 = vcmask 261120
          %v567 = vsel %vm565, %v541, 0
          %569 = vmatprep.subr.bf16.mxu0 0
          %570 = vmatpush1.bf16.msra.mxu0 %v561
          %571 = vmatprep.subr.bf16.mxu0 0
          %572 = vmatpush1.bf16.msra.mxu0 %v562
          %573 = vmatprep.subr.bf16.mxu0 0
          %574 = vmatpush1.bf16.msra.mxu0 0
          %575 = vmatprep.subr.bf16.mxu0 0
          %576 = vmatpush1.bf16.msra.mxu0 0
          %577 = vmatprep.subr.bf16.mxu0 0
          %578 = vmatpush1.bf16.msra.mxu0 0
          %579 = vmatprep.subr.bf16.mxu0 0
          %580 = vmatpush1.bf16.msra.mxu0 0
          %581 = vmatprep.subr.bf16.mxu0 0
          %582 = vmatpush1.bf16.msra.mxu0 0
          %583 = vmatprep.subr.bf16.mxu0 0
          %584 = vmatpush1.bf16.msra.mxu0 0
          %585 = vmatprep.subr.bf16.mxu0 0
          %586 = vmatpush1.bf16.msra.mxu0 0
          %587 = vmatprep.subr.bf16.mxu0 0
          %588 = vmatpush1.bf16.msra.mxu0 0
          %589 = vmatprep.subr.bf16.mxu0 0
          %590 = vmatpush1.bf16.msra.mxu0 0
          %591 = vmatprep.subr.bf16.mxu0 0
          %592 = vmatpush1.bf16.msra.mxu0 0
          %593 = vmatprep.subr.bf16.mxu0 0
          %594 = vmatpush1.bf16.msra.mxu0 0
          %595 = vmatprep.subr.bf16.mxu0 0
          %596 = vmatpush1.bf16.msra.mxu0 0
          %597 = vmatprep.subr.bf16.mxu0 0
          %598 = vmatpush1.bf16.msra.mxu0 0
          %599 = vmatprep.subr.bf16.mxu0 0
          %600 = vmatpush1.bf16.msra.mxu0 0
          %601 = vmatprep.mubr.bf16.mxu0 0
          %602 = vmatmul.mubr.bf16.gmra.mrb[0].mxu0 %v567
          %v603 = vpop.f32.mrb[0].mxu0
          %v604 = vadd.f32 %v551, %v603
          %v605 = vpop.f32.mrb[0].mxu0
          %v606 = vpop.f32.mrb[0].mxu0
          %v607 = vpop.f32.mrb[0].mxu0
          %608 = vdwg.mxu0
          %v609 = vpack.c.bf16 %v604, %v604
          %vm610 = vcmask 257024
          %611 = vst.msk [vmem:[#allocation2] sm:$0xf] %vm610, %v609
          %v613 = vunpack.c.l.b16 %v609
          %v614 = vpack.c.b16 %v613, %v613
          %615 = vrot.lane.b32.xlu0 %v614, 96
          %v616 = vpop.permute.xlu0 %615
          %618 = vst.msk [vmem:[#allocation3] sm:$0xf] %vm610, %v616
        $region104: #{tpu_custom_call.1} parent=59 // pred_fallthru
          _
        %v619 = vld [vmem:[%s461] sm:$0xff]
        %v620 = vpack.c.bf16 %v619, %v619
        %v621 = vld [vmem:[#allocation10] sm:$0xf]
        %v622 = vld [vmem:[#allocation10 + $0x4] sm:$0xf]
        %v623 = vld [vmem:[#allocation10 + $0x8] sm:$0xf]
        %v624 = vld [vmem:[#allocation10 + $0xc] sm:$0xf]
        %v625 = vld [vmem:[#allocation11] sm:$0x1]
        %v627 = vlaneseq
        %v628 = vshrl.u32 %v627, 7
        %v629 = vsub.s32 0, %v628
        %v630 = vrot.slane %v625, %v629
        %v636 = vunpack.c.l.b16 %v621
        %v637 = vunpack.c.l.b16 %v622
        %v638 = vunpack.c.l.b16 %v623
        %v639 = vunpack.c.l.b16 %v624
        %v640 = vpack.c.b16 %v637, %v636
        %v641 = vpack.c.b16 %v639, %v638
        %vm644 = vcmask 261120
        %v646 = vsel %vm644, %v620, 0
        %648 = vmatprep.subr.bf16.mxu0 0
        %649 = vmatpush1.bf16.msra.mxu0 %v640
        %650 = vmatprep.subr.bf16.mxu0 0
        %651 = vmatpush1.bf16.msra.mxu0 %v641
        %652 = vmatprep.subr.bf16.mxu0 0
        %653 = vmatpush1.bf16.msra.mxu0 0
        %654 = vmatprep.subr.bf16.mxu0 0
        %655 = vmatpush1.bf16.msra.mxu0 0
        %656 = vmatprep.subr.bf16.mxu0 0
        %657 = vmatpush1.bf16.msra.mxu0 0
        %658 = vmatprep.subr.bf16.mxu0 0
        %659 = vmatpush1.bf16.msra.mxu0 0
        %660 = vmatprep.subr.bf16.mxu0 0
        %661 = vmatpush1.bf16.msra.mxu0 0
        %662 = vmatprep.subr.bf16.mxu0 0
        %663 = vmatpush1.bf16.msra.mxu0 0
        %664 = vmatprep.subr.bf16.mxu0 0
        %665 = vmatpush1.bf16.msra.mxu0 0
        %666 = vmatprep.subr.bf16.mxu0 0
        %667 = vmatpush1.bf16.msra.mxu0 0
        %668 = vmatprep.subr.bf16.mxu0 0
        %669 = vmatpush1.bf16.msra.mxu0 0
        %670 = vmatprep.subr.bf16.mxu0 0
        %671 = vmatpush1.bf16.msra.mxu0 0
        %672 = vmatprep.subr.bf16.mxu0 0
        %673 = vmatpush1.bf16.msra.mxu0 0
        %674 = vmatprep.subr.bf16.mxu0 0
        %675 = vmatpush1.bf16.msra.mxu0 0
        %676 = vmatprep.subr.bf16.mxu0 0
        %677 = vmatpush1.bf16.msra.mxu0 0
        %678 = vmatprep.subr.bf16.mxu0 0
        %679 = vmatpush1.bf16.msra.mxu0 0
        %680 = vmatprep.mubr.bf16.mxu0 0
        %681 = vmatmul.mubr.bf16.gmra.mrb[0].mxu0 %v646
        %v682 = vpop.f32.mrb[0].mxu0
        %v683 = vadd.f32 %v630, %v682
        %v684 = vpop.f32.mrb[0].mxu0
        %v685 = vpop.f32.mrb[0].mxu0
        %v686 = vpop.f32.mrb[0].mxu0
        %687 = vdwg.mxu0
        %v688 = vpack.c.bf16 %v683, %v683
        %v689 = vld [vmem:[#allocation2] sm:$0xf]
        %vm690 = vcmask 64512
        %v692 = vsel %vm690, %v688, 0
        %v695 = vsel %vm690, %v689, 0
        %697 = vmatprep.subr.bf16.mxu0 0
        %698 = vmatpush1.bf16.xpose.msra.mxu0 %v695
        %699 = vmatprep.subr.bf16.mxu0 0
        %700 = vmatpush1.bf16.xpose.msra.mxu0 0
        %701 = vmatprep.subr.bf16.mxu0 0
        %702 = vmatpush1.bf16.xpose.msra.mxu0 0
        %703 = vmatprep.subr.bf16.mxu0 0
        %704 = vmatpush1.bf16.xpose.msra.mxu0 0
        %705 = vmatprep.subr.bf16.mxu0 0
        %706 = vmatpush1.bf16.xpose.msra.mxu0 0
        %707 = vmatprep.subr.bf16.mxu0 0
        %708 = vmatpush1.bf16.xpose.msra.mxu0 0
        %709 = vmatprep.subr.bf16.mxu0 0
        %710 = vmatpush1.bf16.xpose.msra.mxu0 0
        %711 = vmatprep.subr.bf16.mxu0 0
        %712 = vmatpush1.bf16.xpose.msra.mxu0 0
        %713 = vmatprep.subr.bf16.mxu0 0
        %714 = vmatpush1.bf16.xpose.msra.mxu0 0
        %715 = vmatprep.subr.bf16.mxu0 0
        %716 = vmatpush1.bf16.xpose.msra.mxu0 0
        %717 = vmatprep.subr.bf16.mxu0 0
        %718 = vmatpush1.bf16.xpose.msra.mxu0 0
        %719 = vmatprep.subr.bf16.mxu0 0
        %720 = vmatpush1.bf16.xpose.msra.mxu0 0
        %721 = vmatprep.subr.bf16.mxu0 0
        %722 = vmatpush1.bf16.xpose.msra.mxu0 0
        %723 = vmatprep.subr.bf16.mxu0 0
        %724 = vmatpush1.bf16.xpose.msra.mxu0 0
        %725 = vmatprep.subr.bf16.mxu0 0
        %726 = vmatpush1.bf16.xpose.msra.mxu0 0
        %727 = vmatprep.subr.bf16.mxu0 0
        %728 = vmatpush1.bf16.xpose.msra.mxu0 0
        %729 = vmatprep.mubr.bf16.mxu0 0
        %730 = vmatmul.mubr.bf16.gmra.mrb[0].mxu0 %v692
        %v731 = vpop.f32.mrb[0].mxu0
        %v732 = vadd.f32 0.0, %v731
        %v733 = vpop.f32.mrb[0].mxu0
        %v734 = vpop.f32.mrb[0].mxu0
        %v735 = vpop.f32.mrb[0].mxu0
        %736 = vdwg.mxu0
        %v737 = vsel %vm690, %v732, -inf
        %738 = vmax.xlane.f32.xlu0 %v737
        %v739 = vpop.xlane.xlu0 %738
        %v740 = vsub.f32 %v732, %v739
        %v741 = vmul.f32 %v740, 1.442695
        %v742 = vpow.pop %v741
        %v743 = vsel %vm690, %v742, 0.0
        %744 = vadd.xlane.f32.xlu0 %v743
        %v745 = vpop.xlane.xlu0 %744
        %v746 = vrcp.pop %v745
        %v747 = vmul.f32 %v742, %v746
        %v748 = vpack.c.bf16 %v747, %v747
        %v749 = vld [vmem:[#allocation3] sm:$0xf]
        %v751 = vsel %vm690, %v748, 0
        %vm753 = vcmask 1043456
        %v755 = vsel %vm753, %v749, 0
        %757 = vmatprep.subr.bf16.mxu0 0
        %758 = vmatpush1.bf16.msra.mxu0 %v755
        %759 = vmatprep.subr.bf16.mxu0 0
        %760 = vmatpush1.bf16.msra.mxu0 0
        %761 = vmatprep.subr.bf16.mxu0 0
        %762 = vmatpush1.bf16.msra.mxu0 0
        %763 = vmatprep.subr.bf16.mxu0 0
        %764 = vmatpush1.bf16.msra.mxu0 0
        %765 = vmatprep.subr.bf16.mxu0 0
        %766 = vmatpush1.bf16.msra.mxu0 0
        %767 = vmatprep.subr.bf16.mxu0 0
        %768 = vmatpush1.bf16.msra.mxu0 0
        %769 = vmatprep.subr.bf16.mxu0 0
        %770 = vmatpush1.bf16.msra.mxu0 0
        %771 = vmatprep.subr.bf16.mxu0 0
        %772 = vmatpush1.bf16.msra.mxu0 0
        %773 = vmatprep.subr.bf16.mxu0 0
        %774 = vmatpush1.bf16.msra.mxu0 0
        %775 = vmatprep.subr.bf16.mxu0 0
        %776 = vmatpush1.bf16.msra.mxu0 0
        %777 = vmatprep.subr.bf16.mxu0 0
        %778 = vmatpush1.bf16.msra.mxu0 0
        %779 = vmatprep.subr.bf16.mxu0 0
        %780 = vmatpush1.bf16.msra.mxu0 0
        %781 = vmatprep.subr.bf16.mxu0 0
        %782 = vmatpush1.bf16.msra.mxu0 0
        %783 = vmatprep.subr.bf16.mxu0 0
        %784 = vmatpush1.bf16.msra.mxu0 0
        %785 = vmatprep.subr.bf16.mxu0 0
        %786 = vmatpush1.bf16.msra.mxu0 0
        %787 = vmatprep.subr.bf16.mxu0 0
        %788 = vmatpush1.bf16.msra.mxu0 0
        %789 = vmatprep.mubr.bf16.mxu0 0
        %790 = vmatmul.mubr.bf16.gmra.mrb[0].mxu0 %v751
        %v791 = vpop.f32.mrb[0].mxu0
        %v792 = vadd.f32 0.0, %v791
        %v793 = vpop.f32.mrb[0].mxu0
        %v794 = vpop.f32.mrb[0].mxu0
        %v795 = vpop.f32.mrb[0].mxu0
        %796 = vdwg.mxu0
        %797 = vst.msk [vmem:[#allocation4] sm:$0xff] %vm690, %v792
        %v798 = vld [vmem:[#allocation2] sm:$0xf]
        %800 = vrot.lane.b32.xlu0 %v688, 120
        %v801 = vpop.permute.xlu0 %800
        %v803 = vunpack.c.l.b16 %v798
        %v804 = vpack.c.b16 %v803, %v803
        %805 = vrot.lane.b32.xlu0 %v804, 120
        %v806 = vpop.permute.xlu0 %805
        %v808 = vsel %vm690, %v801, 0
        %v811 = vsel %vm690, %v806, 0
        %813 = vmatprep.subr.bf16.mxu0 0
        %814 = vmatpush1.bf16.xpose.msra.mxu0 %v811
        %815 = vmatprep.subr.bf16.mxu0 0
        %816 = vmatpush1.bf16.xpose.msra.mxu0 0
        %817 = vmatprep.subr.bf16.mxu0 0
        %818 = vmatpush1.bf16.xpose.msra.mxu0 0
        %819 = vmatprep.subr.bf16.mxu0 0
        %820 = vmatpush1.bf16.xpose.msra.mxu0 0
        %821 = vmatprep.subr.bf16.mxu0 0
        %822 = vmatpush1.bf16.xpose.msra.mxu0 0
        %823 = vmatprep.subr.bf16.mxu0 0
        %824 = vmatpush1.bf16.xpose.msra.mxu0 0
        %825 = vmatprep.subr.bf16.mxu0 0
        %826 = vmatpush1.bf16.xpose.msra.mxu0 0
        %827 = vmatprep.subr.bf16.mxu0 0
        %828 = vmatpush1.bf16.xpose.msra.mxu0 0
        %829 = vmatprep.subr.bf16.mxu0 0
        %830 = vmatpush1.bf16.xpose.msra.mxu0 0
        %831 = vmatprep.subr.bf16.mxu0 0
        %832 = vmatpush1.bf16.xpose.msra.mxu0 0
        %833 = vmatprep.subr.bf16.mxu0 0
        %834 = vmatpush1.bf16.xpose.msra.mxu0 0
        %835 = vmatprep.subr.bf16.mxu0 0
        %836 = vmatpush1.bf16.xpose.msra.mxu0 0
        %837 = vmatprep.subr.bf16.mxu0 0
        %838 = vmatpush1.bf16.xpose.msra.mxu0 0
        %839 = vmatprep.subr.bf16.mxu0 0
        %840 = vmatpush1.bf16.xpose.msra.mxu0 0
        %841 = vmatprep.subr.bf16.mxu0 0
        %842 = vmatpush1.bf16.xpose.msra.mxu0 0
        %843 = vmatprep.subr.bf16.mxu0 0
        %844 = vmatpush1.bf16.xpose.msra.mxu0 0
        %845 = vmatprep.mubr.bf16.mxu0 0
        %846 = vmatmul.mubr.bf16.gmra.mrb[0].mxu0 %v808
        %v847 = vpop.f32.mrb[0].mxu0
        %v848 = vadd.f32 0.0, %v847
        %v849 = vpop.f32.mrb[0].mxu0
        %v850 = vpop.f32.mrb[0].mxu0
        %v851 = vpop.f32.mrb[0].mxu0
        %852 = vdwg.mxu0
        %v853 = vsel %vm690, %v848, -inf
        %854 = vmax.xlane.f32.xlu0 %v853
        %v855 = vpop.xlane.xlu0 %854
        %v856 = vsub.f32 %v848, %v855
        %v857 = vmul.f32 %v856, 1.442695
        %v858 = vpow.pop %v857
        %v859 = vsel %vm690, %v858, 0.0
        %860 = vadd.xlane.f32.xlu0 %v859
        %v861 = vpop.xlane.xlu0 %860
        %v862 = vrcp.pop %v861
        %v863 = vmul.f32 %v858, %v862
        %v864 = vpack.c.bf16 %v863, %v863
        %v865 = vld [vmem:[#allocation3] sm:$0xf]
        %v867 = vunpack.c.l.b16 %v865
        %v868 = vpack.c.b16 %v867, %v867
        %869 = vrot.lane.b32.xlu0 %v868, 120
        %v870 = vpop.permute.xlu0 %869
        %v872 = vsel %vm690, %v864, 0
        %v875 = vsel %vm753, %v870, 0
        %877 = vmatprep.subr.bf16.mxu0 0
        %878 = vmatpush1.bf16.msra.mxu0 %v875
        %879 = vmatprep.subr.bf16.mxu0 0
        %880 = vmatpush1.bf16.msra.mxu0 0
        %881 = vmatprep.subr.bf16.mxu0 0
        %882 = vmatpush1.bf16.msra.mxu0 0
        %883 = vmatprep.subr.bf16.mxu0 0
        %884 = vmatpush1.bf16.msra.mxu0 0
        %885 = vmatprep.subr.bf16.mxu0 0
        %886 = vmatpush1.bf16.msra.mxu0 0
        %887 = vmatprep.subr.bf16.mxu0 0
        %888 = vmatpush1.bf16.msra.mxu0 0
        %889 = vmatprep.subr.bf16.mxu0 0
        %890 = vmatpush1.bf16.msra.mxu0 0
        %891 = vmatprep.subr.bf16.mxu0 0
        %892 = vmatpush1.bf16.msra.mxu0 0
        %893 = vmatprep.subr.bf16.mxu0 0
        %894 = vmatpush1.bf16.msra.mxu0 0
        %895 = vmatprep.subr.bf16.mxu0 0
        %896 = vmatpush1.bf16.msra.mxu0 0
        %897 = vmatprep.subr.bf16.mxu0 0
        %898 = vmatpush1.bf16.msra.mxu0 0
        %899 = vmatprep.subr.bf16.mxu0 0
        %900 = vmatpush1.bf16.msra.mxu0 0
        %901 = vmatprep.subr.bf16.mxu0 0
        %902 = vmatpush1.bf16.msra.mxu0 0
        %903 = vmatprep.subr.bf16.mxu0 0
        %904 = vmatpush1.bf16.msra.mxu0 0
        %905 = vmatprep.subr.bf16.mxu0 0
        %906 = vmatpush1.bf16.msra.mxu0 0
        %907 = vmatprep.subr.bf16.mxu0 0
        %908 = vmatpush1.bf16.msra.mxu0 0
        %909 = vmatprep.mubr.bf16.mxu0 0
        %910 = vmatmul.mubr.bf16.gmra.mrb[0].mxu0 %v872
        %v911 = vpop.f32.mrb[0].mxu0
        %v912 = vadd.f32 0.0, %v911
        %v913 = vpop.f32.mrb[0].mxu0
        %v914 = vpop.f32.mrb[0].mxu0
        %v915 = vpop.f32.mrb[0].mxu0
        %916 = vdwg.mxu0
        %918 = vrot.lane.b32.xlu0 %v912, 8
        %v919 = vpop.permute.xlu0 %918
        %vm921 = vcmask 130112
        %922 = vst.msk [vmem:[#allocation4] sm:$0xff] %vm921, %v919
        %v923 = vld [vmem:[#allocation2] sm:$0xf]
        %924 = vrot.lane.b32.xlu0 %v688, 112
        %v925 = vpop.permute.xlu0 %924
        %v927 = vunpack.c.l.b16 %v923
        %v928 = vpack.c.b16 %v927, %v927
        %929 = vrot.lane.b32.xlu0 %v928, 112
        %v930 = vpop.permute.xlu0 %929
        %v932 = vsel %vm690, %v925, 0
        %v935 = vsel %vm690, %v930, 0
        %937 = vmatprep.subr.bf16.mxu0 0
        %938 = vmatpush1.bf16.xpose.msra.mxu0 %v935
        %939 = vmatprep.subr.bf16.mxu0 0
        %940 = vmatpush1.bf16.xpose.msra.mxu0 0
        %941 = vmatprep.subr.bf16.mxu0 0
        %942 = vmatpush1.bf16.xpose.msra.mxu0 0
        %943 = vmatprep.subr.bf16.mxu0 0
        %944 = vmatpush1.bf16.xpose.msra.mxu0 0
        %945 = vmatprep.subr.bf16.mxu0 0
        %946 = vmatpush1.bf16.xpose.msra.mxu0 0
        %947 = vmatprep.subr.bf16.mxu0 0
        %948 = vmatpush1.bf16.xpose.msra.mxu0 0
        %949 = vmatprep.subr.bf16.mxu0 0
        %950 = vmatpush1.bf16.xpose.msra.mxu0 0
        %951 = vmatprep.subr.bf16.mxu0 0
        %952 = vmatpush1.bf16.xpose.msra.mxu0 0
        %953 = vmatprep.subr.bf16.mxu0 0
        %954 = vmatpush1.bf16.xpose.msra.mxu0 0
        %955 = vmatprep.subr.bf16.mxu0 0
        %956 = vmatpush1.bf16.xpose.msra.mxu0 0
        %957 = vmatprep.subr.bf16.mxu0 0
        %958 = vmatpush1.bf16.xpose.msra.mxu0 0
        %959 = vmatprep.subr.bf16.mxu0 0
        %960 = vmatpush1.bf16.xpose.msra.mxu0 0
        %961 = vmatprep.subr.bf16.mxu0 0
        %962 = vmatpush1.bf16.xpose.msra.mxu0 0
        %963 = vmatprep.subr.bf16.mxu0 0
        %964 = vmatpush1.bf16.xpose.msra.mxu0 0
        %965 = vmatprep.subr.bf16.mxu0 0
        %966 = vmatpush1.bf16.xpose.msra.mxu0 0
        %967 = vmatprep.subr.bf16.mxu0 0
        %968 = vmatpush1.bf16.xpose.msra.mxu0 0
        %969 = vmatprep.mubr.bf16.mxu0 0
        %970 = vmatmul.mubr.bf16.gmra.mrb[0].mxu0 %v932
        %v971 = vpop.f32.mrb[0].mxu0
        %v972 = vadd.f32 0.0, %v971
        %v973 = vpop.f32.mrb[0].mxu0
        %v974 = vpop.f32.mrb[0].mxu0
        %v975 = vpop.f32.mrb[0].mxu0
        %976 = vdwg.mxu0
        %v977 = vsel %vm690, %v972, -inf
        %978 = vmax.xlane.f32.xlu0 %v977
        %v979 = vpop.xlane.xlu0 %978
        %v980 = vsub.f32 %v972, %v979
        %v981 = vmul.f32 %v980, 1.442695
        %v982 = vpow.pop %v981
        %v983 = vsel %vm690, %v982, 0.0
        %984 = vadd.xlane.f32.xlu0 %v983
        %v985 = vpop.xlane.xlu0 %984
        %v986 = vrcp.pop %v985
        %v987 = vmul.f32 %v982, %v986
        %v988 = vpack.c.bf16 %v987, %v987
        %v989 = vld [vmem:[#allocation3] sm:$0xf]
        %v991 = vunpack.c.l.b16 %v989
        %v992 = vpack.c.b16 %v991, %v991
        %993 = vrot.lane.b32.xlu0 %v992, 112
        %v994 = vpop.permute.xlu0 %993
        %v996 = vsel %vm690, %v988, 0
        %v999 = vsel %vm753, %v994, 0
        %1001 = vmatprep.subr.bf16.mxu0 0
        %1002 = vmatpush1.bf16.msra.mxu0 %v999
        %1003 = vmatprep.subr.bf16.mxu0 0
        %1004 = vmatpush1.bf16.msra.mxu0 0
        %1005 = vmatprep.subr.bf16.mxu0 0
        %1006 = vmatpush1.bf16.msra.mxu0 0
        %1007 = vmatprep.subr.bf16.mxu0 0
        %1008 = vmatpush1.bf16.msra.mxu0 0
        %1009 = vmatprep.subr.bf16.mxu0 0
        %1010 = vmatpush1.bf16.msra.mxu0 0
        %1011 = vmatprep.subr.bf16.mxu0 0
        %1012 = vmatpush1.bf16.msra.mxu0 0
        %1013 = vmatprep.subr.bf16.mxu0 0
        %1014 = vmatpush1.bf16.msra.mxu0 0
        %1015 = vmatprep.subr.bf16.mxu0 0
        %1016 = vmatpush1.bf16.msra.mxu0 0
        %1017 = vmatprep.subr.bf16.mxu0 0
        %1018 = vmatpush1.bf16.msra.mxu0 0
        %1019 = vmatprep.subr.bf16.mxu0 0
        %1020 = vmatpush1.bf16.msra.mxu0 0
        %1021 = vmatprep.subr.bf16.mxu0 0
        %1022 = vmatpush1.bf16.msra.mxu0 0
        %1023 = vmatprep.subr.bf16.mxu0 0
        %1024 = vmatpush1.bf16.msra.mxu0 0
        %1025 = vmatprep.subr.bf16.mxu0 0
        %1026 = vmatpush1.bf16.msra.mxu0 0
        %1027 = vmatprep.subr.bf16.mxu0 0
        %1028 = vmatpush1.bf16.msra.mxu0 0
        %1029 = vmatprep.subr.bf16.mxu0 0
        %1030 = vmatpush1.bf16.msra.mxu0 0
        %1031 = vmatprep.subr.bf16.mxu0 0
        %1032 = vmatpush1.bf16.msra.mxu0 0
        %1033 = vmatprep.mubr.bf16.mxu0 0
        %1034 = vmatmul.mubr.bf16.gmra.mrb[0].mxu0 %v996
        %v1035 = vpop.f32.mrb[0].mxu0
        %v1036 = vadd.f32 0.0, %v1035
        %v1037 = vpop.f32.mrb[0].mxu0
        %v1038 = vpop.f32.mrb[0].mxu0
        %v1039 = vpop.f32.mrb[0].mxu0
        %1040 = vdwg.mxu0
        %1042 = vrot.lane.b32.xlu0 %v1036, 16
        %v1043 = vpop.permute.xlu0 %1042
        %vm1045 = vcmask 195712
        %1046 = vst.msk [vmem:[#allocation4] sm:$0xff] %vm1045, %v1043
        %v1047 = vld [vmem:[#allocation2] sm:$0xf]
        %1048 = vrot.lane.b32.xlu0 %v688, 104
        %v1049 = vpop.permute.xlu0 %1048
        %v1051 = vunpack.c.l.b16 %v1047
        %v1052 = vpack.c.b16 %v1051, %v1051
        %1053 = vrot.lane.b32.xlu0 %v1052, 104
        %v1054 = vpop.permute.xlu0 %1053
        %v1056 = vsel %vm690, %v1049, 0
        %v1059 = vsel %vm690, %v1054, 0
        %1061 = vmatprep.subr.bf16.mxu0 0
        %1062 = vmatpush1.bf16.xpose.msra.mxu0 %v1059
        %1063 = vmatprep.subr.bf16.mxu0 0
        %1064 = vmatpush1.bf16.xpose.msra.mxu0 0
        %1065 = vmatprep.subr.bf16.mxu0 0
        %1066 = vmatpush1.bf16.xpose.msra.mxu0 0
        %1067 = vmatprep.subr.bf16.mxu0 0
        %1068 = vmatpush1.bf16.xpose.msra.mxu0 0
        %1069 = vmatprep.subr.bf16.mxu0 0
        %1070 = vmatpush1.bf16.xpose.msra.mxu0 0
        %1071 = vmatprep.subr.bf16.mxu0 0
        %1072 = vmatpush1.bf16.xpose.msra.mxu0 0
        %1073 = vmatprep.subr.bf16.mxu0 0
        %1074 = vmatpush1.bf16.xpose.msra.mxu0 0
        %1075 = vmatprep.subr.bf16.mxu0 0
        %1076 = vmatpush1.bf16.xpose.msra.mxu0 0
        %1077 = vmatprep.subr.bf16.mxu0 0
        %1078 = vmatpush1.bf16.xpose.msra.mxu0 0
        %1079 = vmatprep.subr.bf16.mxu0 0
        %1080 = vmatpush1.bf16.xpose.msra.mxu0 0
        %1081 = vmatprep.subr.bf16.mxu0 0
        %1082 = vmatpush1.bf16.xpose.msra.mxu0 0
        %1083 = vmatprep.subr.bf16.mxu0 0
        %1084 = vmatpush1.bf16.xpose.msra.mxu0 0
        %1085 = vmatprep.subr.bf16.mxu0 0
        %1086 = vmatpush1.bf16.xpose.msra.mxu0 0
        %1087 = vmatprep.subr.bf16.mxu0 0
        %1088 = vmatpush1.bf16.xpose.msra.mxu0 0
        %1089 = vmatprep.subr.bf16.mxu0 0
        %1090 = vmatpush1.bf16.xpose.msra.mxu0 0
        %1091 = vmatprep.subr.bf16.mxu0 0
        %1092 = vmatpush1.bf16.xpose.msra.mxu0 0
        %1093 = vmatprep.mubr.bf16.mxu0 0
        %1094 = vmatmul.mubr.bf16.gmra.mrb[0].mxu0 %v1056
        %v1095 = vpop.f32.mrb[0].mxu0
        %v1096 = vadd.f32 0.0, %v1095
        %v1097 = vpop.f32.mrb[0].mxu0
        %v1098 = vpop.f32.mrb[0].mxu0
        %v1099 = vpop.f32.mrb[0].mxu0
        %1100 = vdwg.mxu0
        %v1101 = vsel %vm690, %v1096, -inf
        %1102 = vmax.xlane.f32.xlu0 %v1101
        %v1103 = vpop.xlane.xlu0 %1102
        %v1104 = vsub.f32 %v1096, %v1103
        %v1105 = vmul.f32 %v1104, 1.442695
        %v1106 = vpow.pop %v1105
        %v1107 = vsel %vm690, %v1106, 0.0
        %1108 = vadd.xlane.f32.xlu0 %v1107
        %v1109 = vpop.xlane.xlu0 %1108
        %v1110 = vrcp.pop %v1109
        %v1111 = vmul.f32 %v1106, %v1110
        %v1112 = vpack.c.bf16 %v1111, %v1111
        %v1113 = vld [vmem:[#allocation3] sm:$0xf]
        %v1115 = vunpack.c.l.b16 %v1113
        %v1116 = vpack.c.b16 %v1115, %v1115
        %1117 = vrot.lane.b32.xlu0 %v1116, 104
        %v1118 = vpop.permute.xlu0 %1117
        %v1120 = vsel %vm690, %v1112, 0
        %v1123 = vsel %vm753, %v1118, 0
        %1125 = vmatprep.subr.bf16.mxu0 0
        %1126 = vmatpush1.bf16.msra.mxu0 %v1123
        %1127 = vmatprep.subr.bf16.mxu0 0
        %1128 = vmatpush1.bf16.msra.mxu0 0
        %1129 = vmatprep.subr.bf16.mxu0 0
        %1130 = vmatpush1.bf16.msra.mxu0 0
        %1131 = vmatprep.subr.bf16.mxu0 0
        %1132 = vmatpush1.bf16.msra.mxu0 0
        %1133 = vmatprep.subr.bf16.mxu0 0
        %1134 = vmatpush1.bf16.msra.mxu0 0
        %1135 = vmatprep.subr.bf16.mxu0 0
        %1136 = vmatpush1.bf16.msra.mxu0 0
        %1137 = vmatprep.subr.bf16.mxu0 0
        %1138 = vmatpush1.bf16.msra.mxu0 0
        %1139 = vmatprep.subr.bf16.mxu0 0
        %1140 = vmatpush1.bf16.msra.mxu0 0
        %1141 = vmatprep.subr.bf16.mxu0 0
        %1142 = vmatpush1.bf16.msra.mxu0 0
        %1143 = vmatprep.subr.bf16.mxu0 0
        %1144 = vmatpush1.bf16.msra.mxu0 0
        %1145 = vmatprep.subr.bf16.mxu0 0
        %1146 = vmatpush1.bf16.msra.mxu0 0
        %1147 = vmatprep.subr.bf16.mxu0 0
        %1148 = vmatpush1.bf16.msra.mxu0 0
        %1149 = vmatprep.subr.bf16.mxu0 0
        %1150 = vmatpush1.bf16.msra.mxu0 0
        %1151 = vmatprep.subr.bf16.mxu0 0
        %1152 = vmatpush1.bf16.msra.mxu0 0
        %1153 = vmatprep.subr.bf16.mxu0 0
        %1154 = vmatpush1.bf16.msra.mxu0 0
        %1155 = vmatprep.subr.bf16.mxu0 0
        %1156 = vmatpush1.bf16.msra.mxu0 0
        %1157 = vmatprep.mubr.bf16.mxu0 0
        %1158 = vmatmul.mubr.bf16.gmra.mrb[0].mxu0 %v1120
        %v1159 = vpop.f32.mrb[0].mxu0
        %v1160 = vadd.f32 0.0, %v1159
        %v1161 = vpop.f32.mrb[0].mxu0
        %v1162 = vpop.f32.mrb[0].mxu0
        %v1163 = vpop.f32.mrb[0].mxu0
        %1164 = vdwg.mxu0
        %1166 = vrot.lane.b32.xlu0 %v1160, 24
        %v1167 = vpop.permute.xlu0 %1166
        %vm1169 = vcmask 261312
        %1170 = vst.msk [vmem:[#allocation4] sm:$0xff] %vm1169, %v1167
        %v1171 = vld [vmem:[#allocation4] sm:$0xff]
        %v1172 = vpack.c.bf16 %v1171, %v1171
        %v1173 = vld [vmem:[#allocation16] sm:$0xf]
        %v1174 = vld [vmem:[#allocation16 + $0x4] sm:$0xf]
        %v1175 = vld [vmem:[#allocation16 + $0x8] sm:$0xf]
        %v1176 = vld [vmem:[#allocation16 + $0xc] sm:$0xf]
        %v1177 = vld [vmem:[#allocation17] sm:$0x1]
        %v1179 = vlaneseq
        %v1180 = vshrl.u32 %v1179, 7
        %v1181 = vsub.s32 0, %v1180
        %v1182 = vrot.slane %v1177, %v1181
        %v1188 = vunpack.c.l.b16 %v1173
        %v1189 = vunpack.c.l.b16 %v1174
        %v1190 = vunpack.c.l.b16 %v1175
        %v1191 = vunpack.c.l.b16 %v1176
        %v1192 = vpack.c.b16 %v1189, %v1188
        %v1193 = vpack.c.b16 %v1191, %v1190
        %v1197 = vsel %vm644, %v1172, 0
        %1199 = vmatprep.subr.bf16.mxu0 0
        %1200 = vmatpush1.bf16.msra.mxu0 %v1192
        %1201 = vmatprep.subr.bf16.mxu0 0
        %1202 = vmatpush1.bf16.msra.mxu0 %v1193
        %1203 = vmatprep.subr.bf16.mxu0 0
        %1204 = vmatpush1.bf16.msra.mxu0 0
        %1205 = vmatprep.subr.bf16.mxu0 0
        %1206 = vmatpush1.bf16.msra.mxu0 0
        %1207 = vmatprep.subr.bf16.mxu0 0
        %1208 = vmatpush1.bf16.msra.mxu0 0
        %1209 = vmatprep.subr.bf16.mxu0 0
        %1210 = vmatpush1.bf16.msra.mxu0 0
        %1211 = vmatprep.subr.bf16.mxu0 0
        %1212 = vmatpush1.bf16.msra.mxu0 0
        %1213 = vmatprep.subr.bf16.mxu0 0
        %1214 = vmatpush1.bf16.msra.mxu0 0
        %1215 = vmatprep.subr.bf16.mxu0 0
        %1216 = vmatpush1.bf16.msra.mxu0 0
        %1217 = vmatprep.subr.bf16.mxu0 0
        %1218 = vmatpush1.bf16.msra.mxu0 0
        %1219 = vmatprep.subr.bf16.mxu0 0
        %1220 = vmatpush1.bf16.msra.mxu0 0
        %1221 = vmatprep.subr.bf16.mxu0 0
        %1222 = vmatpush1.bf16.msra.mxu0 0
        %1223 = vmatprep.subr.bf16.mxu0 0
        %1224 = vmatpush1.bf16.msra.mxu0 0
        %1225 = vmatprep.subr.bf16.mxu0 0
        %1226 = vmatpush1.bf16.msra.mxu0 0
        %1227 = vmatprep.subr.bf16.mxu0 0
        %1228 = vmatpush1.bf16.msra.mxu0 0
        %1229 = vmatprep.subr.bf16.mxu0 0
        %1230 = vmatpush1.bf16.msra.mxu0 0
        %1231 = vmatprep.mubr.bf16.mxu0 0
        %1232 = vmatmul.mubr.bf16.gmra.mrb[0].mxu0 %v1197
        %v1233 = vpop.f32.mrb[0].mxu0
        %v1234 = vadd.f32 %v1182, %v1233
        %v1235 = vpop.f32.mrb[0].mxu0
        %v1236 = vpop.f32.mrb[0].mxu0
        %v1237 = vpop.f32.mrb[0].mxu0
        %1238 = vdwg.mxu0
        %v1239 = vadd.f32 %v619, %v1234
        %v1240 = vld [vmem:[#allocation19] sm:$0x1]
        %v1241 = vld [vmem:[#allocation20] sm:$0x1]
        %v1242 = vsel %vm644, %v1239, 0.0
        %1243 = vadd.xlane.f32.xlu0 %v1242
        %v1244 = vpop.xlane.xlu0 %1243
        %v1245 = vrcp.pop 32.0
        %v1246 = vmul.f32 %v1244, %v1245
        %v1247 = vsub.f32 %v1239, %v1246
        %v1248 = vmul.f32 %v1247, %v1247
        %v1249 = vsel %vm644, %v1248, 0.0
        %1250 = vadd.xlane.f32.xlu0 %v1249
        %v1251 = vpop.xlane.xlu0 %1250
        %v1252 = vmul.f32 %v1251, 0.032258064
        %v1253 = vadd.f32 %v1252, 1e-05
        %v1254 = vrsqrt.pop %v1253
        %v1255 = vmul.f32 %v1247, %v1254
        %v1257 = vlaneseq
        %v1258 = vshrl.u32 %v1257, 7
        %v1259 = vsub.s32 0, %v1258
        %v1260 = vrot.slane %v1240, %v1259
        %v1262 = vmul.f32 %v1260, %v1255
        %v1264 = vlaneseq
        %v1265 = vshrl.u32 %v1264, 7
        %v1266 = vsub.s32 0, %v1265
        %v1267 = vrot.slane %v1241, %v1266
        %v1269 = vadd.f32 %v1262, %v1267
        %1270 = vst.msk [vmem:[%s534] sm:$0xff] %vm644, %v1269
        %s1271 = sand.u32 %s278, 1
        %s1272 = scalar_lea.sflag [#allocation7], %s1271
        %s1273 = sand.u32 %s278, 1
        %s1274 = smul.addr %s1273, 8
        %s1275 = scalar_lea.vmem [#allocation22], %s1274
        // Predicated region
        $region105: #{tpu_custom_call.1} parent=59 // pred_check
          %p1276 = pneg %p288
        $region106: #{tpu_custom_call.1} parent=59 // pred_check_branch
          %1278 = sbr.rel (%p1276) target = $region108
        $region107: #{tpu_custom_call.1} parent=59 // pred_region
          %s1280 = ssub.s32 128, 128
          %1281 = vsyncadd %s1272, %s1280
          %s1282 = sadd.s32 %s39, %s38
          %s1283 = smul.addr %s1282, 128
          %s1284 = scalar_lea.hbm %s10, %s1283
          %s1286 = sshll.u32 %s1275, 4
          %s1287 = int_to_ptr.vmem [resolvable:$true] %s1286
          %1289 = dma.vmem_to_hbm [thread:$0]  %s1287, 128, %s1284, %s1272
        $region108: #{tpu_custom_call.1} parent=59 // pred_fallthru
          _
      $region60: #{tpu_custom_call.1} parent=5 // pred_fallthru
        _
      %p1290 = scmp.le.s32.totalorder 2, %s29
      // Predicated region
      $region109: #{tpu_custom_call.1} parent=5 // pred_check
        %p1291 = pneg %p1290
      $region110: #{tpu_custom_call.1} parent=5 // pred_check_branch
        %1293 = sbr.rel (%p1291) target = $region112
      $region111: #{tpu_custom_call.1} parent=5 // pred_region
        %s1294 = ssub.s32 %s29, 2
        // Predicated region
        $region113: #{tpu_custom_call.1} parent=111 // pred_check
          %p1295 = pneg %p294
        $region114: #{tpu_custom_call.1} parent=111 // pred_check_branch
          %1297 = sbr.rel (%p1295) target = $region116
        $region115: #{tpu_custom_call.1} parent=111 // pred_region
          %s1298 = sand.u32 %s279, 1
          %s1299 = scalar_lea.sflag [#allocation7], %s1298
          %s1300 = sand.u32 %s279, 1
          %s1301 = smul.addr %s1300, 8
          %s1302 = scalar_lea.vmem [#allocation22], %s1301
          %1303 = dma.done %s1299, 128
        $region116: #{tpu_custom_call.1} parent=111 // pred_fallthru
          _
      $region112: #{tpu_custom_call.1} parent=5 // pred_fallthru
        _
    $region6: #{tpu_custom_call.1} parent=1 // loop_footer
      %s33 = sadd.s32 1, %s29
    $region7: #{tpu_custom_call.1} parent=1 // loop_footer_branch
      %28 = sbr.rel target = $region3
    $region8: #{tpu_custom_call.1} parent=1 // loop_exit
      _
    %1304 = vsyncpa [#allocation6], 1
    %s1305 = scalar_lea.sflag [#allocation6], 1
    %1306 = vsyncpa %s1305, 1
    %1307 = vsyncpa [#allocation9], 1
    %s1308 = scalar_lea.sflag [#allocation9], 1
    %1309 = vsyncpa %s1308, 1
    %1310 = vsyncpa [#allocation12], 1
    %1311 = vsyncpa [#allocation15], 1
    %1312 = vsyncpa [#allocation18], 1
    %1313 = vsyncpa [#allocation21], 1
    %1314 = vsyncpa [#allocation7], 1
    %s1315 = scalar_lea.sflag [#allocation7], 1
    %1316 = vsyncpa %s1315, 1

</llo_original>
